<compile_context>
chip_gen: v5e
topology: v5e:2x2
jax: 0.10.0
libtpu: 0.0.40
codegen_flags: <defaults>
</compile_context>

<pallas_src>
import functools

import jax
import jax.numpy as jnp
from jax import lax
from jax.experimental import pallas as pl
from jax.experimental.pallas import tpu as pltpu

_EPS = 1e-5


def _is_pow2(v: int) -> bool:
    return v > 0 and (v & (v - 1)) == 0


def _resblock_kernel(x_ref, w1_ref, b1_ref, w2_ref, b2_ref, o_ref, *,
                     N, H, W, mm_dtype):
    """Fused ResBlock forward on the whole batch-folded slab.

    x_ref  : (C, N*H*W)  activations; image n occupies lanes [n*H*W, (n+1)*H*W)
    w*_ref : (9, C, C)   conv weights, tap k = dy*3 + dx, layout (Cout, Cin)
    b*_ref : (C, 1)      conv bias (f32)
    o_ref  : (C, N*H*W)  output
    """
    HW = H * W
    NHW = N * HW
    x = x_ref[...]                                   # (C, NHW)

    # ---- per-lane (image, row, col) ids built in-kernel (no pos input) ----
    g = lax.broadcasted_iota(jnp.int32, (1, NHW), 1)
    if _is_pow2(HW):
        img = jnp.right_shift(g, HW.bit_length() - 1)
        l = jnp.bitwise_and(g, HW - 1)
    else:
        img = g // HW
        l = g - img * HW
    if _is_pow2(W):
        row = jnp.right_shift(l, W.bit_length() - 1)
        col = jnp.bitwise_and(l, W - 1)
    else:
        row = l // W
        col = l - row * W
    # (1, NHW) masks; broadcast over sublanes inside jnp.where.
    first_row = row == 0
    last_row = row == H - 1
    first_col = col == 0
    last_col = col == W - 1

    def rolled(a, delta):
        # result[l] = a[(l + delta) % NHW].  pltpu.roll matches jnp.roll:
        # roll(a, s)[l] = a[(l - s) % n], hence s = -delta.  Cross-image /
        # wrap-around lanes only show up at boundary positions, where the
        # reflect selects below never pick them.
        return pltpu.roll(a, (-delta) % NHW, 1)

    def conv3x3(a, w_ref, b):
        """Reflect-padded 3x3 conv as nine per-tap (C,C)x(C,NHW) MXU dots."""
        a_dn = rolled(a, W)        # value of row h+1
        a_up = rolled(a, -W)       # value of row h-1
        rows = (
            jnp.where(first_row, a_dn, a_up),   # dy=0: row h-1 (reflected at top)
            a,                                  # dy=1
            jnp.where(last_row, a_up, a_dn),    # dy=2: row h+1 (reflected at bottom)
        )
        acc = None
        for dy, r in enumerate(rows):
            c_next = rolled(r, 1)               # column w+1
            c_prev = rolled(r, -1)              # column w-1
            taps = (
                jnp.where(first_col, c_next, c_prev),   # dx=0: col w-1 (reflected)
                r,                                      # dx=1
                jnp.where(last_col, c_prev, c_next),    # dx=2: col w+1 (reflected)
            )
            for dx, t in enumerate(taps):
                k = dy * 3 + dx
                d = jnp.dot(w_ref[k], t.astype(mm_dtype),
                            preferred_element_type=jnp.float32)
                acc = d if acc is None else acc + d
        return acc + b

    def instance_norm(y):
        """Per-(image, channel) biased mean/var over H*W via (1, NHW) masks."""
        inv_hw = 1.0 / HW
        mean_map = None
        rstd_map = None
        for n in range(N):
            m = (img == n).astype(jnp.float32)                      # (1, NHW)
            ym = y * m
            mean = jnp.sum(ym, axis=1, keepdims=True) * inv_hw      # (C, 1)
            ex2 = jnp.sum(ym * ym, axis=1, keepdims=True) * inv_hw
            # Single-pass variance kept in f32 (matmul may be bf16, stats are not).
            rstd = lax.rsqrt(ex2 - mean * mean + _EPS)
            mm_ = mean * m                                          # (C, NHW)
            rr_ = rstd * m
            mean_map = mm_ if mean_map is None else mean_map + mm_
            rstd_map = rr_ if rstd_map is None else rstd_map + rr_
        return (y - mean_map) * rstd_map

    xf = x.astype(jnp.float32)
    # conv -> InstanceNorm -> ReLU
    y = jnp.maximum(instance_norm(conv3x3(xf, w1_ref, b1_ref[...])), 0.0)
    # TODO(synk): use_dropout=False configuration; nn.Dropout(0.5) branch not emitted.
    # conv -> InstanceNorm
    y = instance_norm(conv3x3(y, w2_ref, b2_ref[...]))
    # residual add + final ReLU
    o_ref[...] = jnp.maximum(xf + y, 0.0).astype(o_ref.dtype)


def resblock_forward(x_nchw, w1_hwio, b1, w2_hwio, b2, *, matmul_dtype=None):
    """ResBlock forward.

    x_nchw : (N, C, H, W)
    w*_hwio: (3, 3, Cin, Cout)   (a PyTorch OIHW weight maps via transpose(2,3,1,0))
    b*     : (C,)
    matmul_dtype: dtype for the MXU operands only (e.g. jnp.bfloat16 on
        v5e/v6e/v7x).  VPU work (taps, InstanceNorm, residual, ReLU) stays f32.
    """
    N, C, H, W = x_nchw.shape
    HW = H * W
    NHW = N * HW
    dtype = x_nchw.dtype
    mm_dtype = jnp.dtype(dtype if matmul_dtype is None else matmul_dtype)

    # Fold batch onto the lane axis: (C, N*H*W) lane-dense activations.
    x_flat = jnp.transpose(x_nchw, (1, 0, 2, 3)).reshape(C, NHW)

    # (3,3,Cin,Cout) -> (9, Cout, Cin), tap index k = dy*3+dx; packed & cast ONCE.
    def pack_w(w):
        return jnp.transpose(w, (0, 1, 3, 2)).reshape(9, C, C).astype(mm_dtype)

    w1p, w2p = pack_w(w1_hwio), pack_w(w2_hwio)
    b1c = b1.reshape(C, 1).astype(jnp.float32)
    b2c = b2.reshape(C, 1).astype(jnp.float32)

    kernel = functools.partial(_resblock_kernel, N=N, H=H, W=W, mm_dtype=mm_dtype)

    mm_bytes = mm_dtype.itemsize
    flops = 2 * 2 * C * (9 * C) * NHW                       # two 3x3 convs
    bytes_accessed = (2 * C * NHW * jnp.dtype(dtype).itemsize
                      + 2 * 9 * C * C * mm_bytes + 2 * C * 4)

    # Single grid step: the whole problem (~8 KiB at demo shape) lives in VMEM,
    # so per-step pipeline overhead and invariant-operand double-buffering are
    # gone.  NOTE(scaling): at CycleGAN shapes (C=256, 64x64+) re-tile into lane
    # strips with halo-aware reflection, carry IN stats over an "arbitrary"
    # reduction axis with a finalize step, keep >=2 parallel blocks for v7x's
    # two TensorCores, single-buffer the (9,C,C) weights (pl.Buffered(1)), and
    # re-derive VMEM budget against v7x's 64 MiB.
    out = pl.pallas_call(
        kernel,
        out_shape=jax.ShapeDtypeStruct((C, NHW), dtype),
        compiler_params=pltpu.CompilerParams(vmem_limit_bytes=32 * 1024 * 1024),
        cost_estimate=pl.CostEstimate(
            flops=flops, transcendentals=2 * N * C, bytes_accessed=bytes_accessed),
    )(x_flat, w1p, b1c, w2p, b2c)

    return jnp.transpose(out.reshape(C, N, H, W), (1, 0, 2, 3))


def _reference_forward(x, w1_hwio, b1, w2_hwio, b2):
    """Pure-JAX reference matching the PyTorch forward (NCHW)."""
    def conv_block(inp, w, b):
        xp = jnp.pad(inp, ((0, 0), (0, 0), (1, 1), (1, 1)), mode="reflect")
        y = lax.conv_general_dilated(
            xp, w, (1, 1), "VALID", dimension_numbers=("NCHW", "HWIO", "NCHW"))
        return y + b.reshape(1, -1, 1, 1)

    def inorm(y):
        m = jnp.mean(y, axis=(2, 3), keepdims=True)
        v = jnp.mean(jnp.square(y - m), axis=(2, 3), keepdims=True)
        return (y - m) * lax.rsqrt(v + _EPS)

    y = jax.nn.relu(inorm(conv_block(x, w1_hwio, b1)))
    y = inorm(conv_block(y, w2_hwio, b2))
    return jax.nn.relu(x + y)


if __name__ == "__main__":
    # Small shapes consistent with the module: dim = channels = 4.
    N, C, H, W = 2, 4, 16, 16

    key = jax.random.PRNGKey(0)
    kx, kw1, kb1, kw2, kb2 = jax.random.split(key, 5)

    x = jax.random.normal(kx, (N, C, H, W), jnp.float32)
    # Conv2d(dim, dim, 3) weights stored HWIO (3, 3, Cin, Cout) + bias (Cout,)
    w1 = jax.random.normal(kw1, (3, 3, C, C), jnp.float32) * 0.1
    b1 = jax.random.normal(kb1, (C,), jnp.float32) * 0.1
    w2 = jax.random.normal(kw2, (3, 3, C, C), jnp.float32) * 0.1
    b2 = jax.random.normal(kb2, (C,), jnp.float32) * 0.1

    out = jax.block_until_ready(resblock_forward(x, w1, b1, w2, b2))
    ref = jax.block_until_ready(_reference_forward(x, w1, b1, w2, b2))

    assert out.shape == (N, C, H, W)
    err = float(jnp.max(jnp.abs(out - ref)))
    assert jnp.allclose(out, ref, atol=2e-4, rtol=2e-4), f"max abs err {err}"

    # bf16 MXU-operand path (the v5e/v6e/v7x perf item); VPU math stays f32,
    # so only matmul rounding differs -> looser tolerance.
    out_bf16 = jax.block_until_ready(
        resblock_forward(x, w1, b1, w2, b2, matmul_dtype=jnp.bfloat16))
    err_bf16 = float(jnp.max(jnp.abs(out_bf16 - ref)))
    assert err_bf16 < 1e-1, f"bf16-matmul max abs err {err_bf16}"

    print("KERNEL_OK")
</pallas_src>

<mosaic_0001>
module attributes {stable_mosaic.version = 11 : i64} {
  func.func @_resblock_kernel(%arg0: memref<4x512xf32, #tpu.memory_space<vmem>>, %arg1: memref<9x4x4xf32, #tpu.memory_space<vmem>>, %arg2: memref<4x1xf32, #tpu.memory_space<vmem>>, %arg3: memref<9x4x4xf32, #tpu.memory_space<vmem>>, %arg4: memref<4x1xf32, #tpu.memory_space<vmem>>, %arg5: memref<4x512xf32, #tpu.memory_space<vmem>>) attributes {dimension_semantics = [], scalar_prefetch = 0 : i64, scratch_operands = 0 : i64, tpu.core_type = #tpu.core_type<tc>} {
    %c0 = arith.constant 0 : index
    %c0_0 = arith.constant 0 : index
    %0 = vector.load %arg0[%c0, %c0_0] : memref<4x512xf32, #tpu.memory_space<vmem>>, vector<4x512xf32>
    %1 = tpu.iota {dimensions = array<i32: 1>} : vector<1x512xi32>
    %c8_i32 = arith.constant 8 : i32
    %2 = vector.broadcast %c8_i32 : i32 to vector<1x512xi32>
    %3 = arith.shrsi %1, %2 : vector<1x512xi32>
    %c255_i32 = arith.constant 255 : i32
    %4 = vector.broadcast %c255_i32 : i32 to vector<1x512xi32>
    %5 = arith.andi %1, %4 : vector<1x512xi32>
    %c4_i32 = arith.constant 4 : i32
    %6 = vector.broadcast %c4_i32 : i32 to vector<1x512xi32>
    %7 = arith.shrsi %5, %6 : vector<1x512xi32>
    %c15_i32 = arith.constant 15 : i32
    %8 = vector.broadcast %c15_i32 : i32 to vector<1x512xi32>
    %9 = arith.andi %5, %8 : vector<1x512xi32>
    %c0_i32 = arith.constant 0 : i32
    %10 = vector.broadcast %c0_i32 : i32 to vector<1x512xi32>
    %11 = arith.cmpi eq, %7, %10 : vector<1x512xi32>
    %c15_i32_1 = arith.constant 15 : i32
    %12 = vector.broadcast %c15_i32_1 : i32 to vector<1x512xi32>
    %13 = arith.cmpi eq, %7, %12 : vector<1x512xi32>
    %c0_i32_2 = arith.constant 0 : i32
    %14 = vector.broadcast %c0_i32_2 : i32 to vector<1x512xi32>
    %15 = arith.cmpi eq, %9, %14 : vector<1x512xi32>
    %c15_i32_3 = arith.constant 15 : i32
    %16 = vector.broadcast %c15_i32_3 : i32 to vector<1x512xi32>
    %17 = arith.cmpi eq, %9, %16 : vector<1x512xi32>
    %c0_4 = arith.constant 0 : index
    %c0_5 = arith.constant 0 : index
    %18 = vector.load %arg2[%c0_4, %c0_5] : memref<4x1xf32, #tpu.memory_space<vmem>>, vector<4x1xf32>
    %c496_i32 = arith.constant 496 : i32
    %19 = tpu.dynamic_rotate %0 by %c496_i32 dim 1 : vector<4x512xf32>, i32 -> vector<4x512xf32>
    %c16_i32 = arith.constant 16 : i32
    %20 = tpu.dynamic_rotate %0 by %c16_i32 dim 1 : vector<4x512xf32>, i32 -> vector<4x512xf32>
    %21 = vector.shape_cast %11 : vector<1x512xi1> to vector<1x512xi1>
    %22 = vector.broadcast %21 : vector<1x512xi1> to vector<4x512xi1>
    %23 = arith.select %22, %19, %20 : vector<4x512xi1>, vector<4x512xf32>
    %24 = vector.shape_cast %13 : vector<1x512xi1> to vector<1x512xi1>
    %25 = vector.broadcast %24 : vector<1x512xi1> to vector<4x512xi1>
    %26 = arith.select %25, %20, %19 : vector<4x512xi1>, vector<4x512xf32>
    %c511_i32 = arith.constant 511 : i32
    %27 = tpu.dynamic_rotate %23 by %c511_i32 dim 1 : vector<4x512xf32>, i32 -> vector<4x512xf32>
    %c1_i32 = arith.constant 1 : i32
    %28 = tpu.dynamic_rotate %23 by %c1_i32 dim 1 : vector<4x512xf32>, i32 -> vector<4x512xf32>
    %29 = vector.shape_cast %15 : vector<1x512xi1> to vector<1x512xi1>
    %30 = vector.broadcast %29 : vector<1x512xi1> to vector<4x512xi1>
    %31 = arith.select %30, %27, %28 : vector<4x512xi1>, vector<4x512xf32>
    %32 = vector.shape_cast %17 : vector<1x512xi1> to vector<1x512xi1>
    %33 = vector.broadcast %32 : vector<1x512xi1> to vector<4x512xi1>
    %34 = arith.select %33, %28, %27 : vector<4x512xi1>, vector<4x512xf32>
    %c0_6 = arith.constant 0 : index
    %c0_7 = arith.constant 0 : index
    %c0_8 = arith.constant 0 : index
    %35 = vector.load %arg1[%c0_6, %c0_7, %c0_8] : memref<9x4x4xf32, #tpu.memory_space<vmem>>, vector<1x4x4xf32>
    %36 = vector.shape_cast %35 : vector<1x4x4xf32> to vector<4x4xf32>
    %cst = arith.constant dense<0.000000e+00> : vector<4x512xf32>
    %37 = tpu.matmul %36, %31, %cst {dimension_numbers = #tpu.dot_dimension_numbers<[1], [0], [0], [1], [0, 0, 1, 1], [], []>} : vector<4x4xf32>, vector<4x512xf32>, vector<4x512xf32> -> vector<4x512xf32>
    %c1 = arith.constant 1 : index
    %c0_9 = arith.constant 0 : index
    %c0_10 = arith.constant 0 : index
    %38 = vector.load %arg1[%c1, %c0_9, %c0_10] : memref<9x4x4xf32, #tpu.memory_space<vmem>>, vector<1x4x4xf32>
    %39 = vector.shape_cast %38 : vector<1x4x4xf32> to vector<4x4xf32>
    %cst_11 = arith.constant dense<0.000000e+00> : vector<4x512xf32>
    %40 = tpu.matmul %39, %23, %cst_11 {dimension_numbers = #tpu.dot_dimension_numbers<[1], [0], [0], [1], [0, 0, 1, 1], [], []>} : vector<4x4xf32>, vector<4x512xf32>, vector<4x512xf32> -> vector<4x512xf32>
    %41 = arith.addf %37, %40 : vector<4x512xf32>
    %c2 = arith.constant 2 : index
    %c0_12 = arith.constant 0 : index
    %c0_13 = arith.constant 0 : index
    %42 = vector.load %arg1[%c2, %c0_12, %c0_13] : memref<9x4x4xf32, #tpu.memory_space<vmem>>, vector<1x4x4xf32>
    %43 = vector.shape_cast %42 : vector<1x4x4xf32> to vector<4x4xf32>
    %cst_14 = arith.constant dense<0.000000e+00> : vector<4x512xf32>
    %44 = tpu.matmul %43, %34, %cst_14 {dimension_numbers = #tpu.dot_dimension_numbers<[1], [0], [0], [1], [0, 0, 1, 1], [], []>} : vector<4x4xf32>, vector<4x512xf32>, vector<4x512xf32> -> vector<4x512xf32>
    %45 = arith.addf %41, %44 : vector<4x512xf32>
    %c511_i32_15 = arith.constant 511 : i32
    %46 = tpu.dynamic_rotate %0 by %c511_i32_15 dim 1 : vector<4x512xf32>, i32 -> vector<4x512xf32>
    %c1_i32_16 = arith.constant 1 : i32
    %47 = tpu.dynamic_rotate %0 by %c1_i32_16 dim 1 : vector<4x512xf32>, i32 -> vector<4x512xf32>
    %48 = vector.shape_cast %15 : vector<1x512xi1> to vector<1x512xi1>
    %49 = vector.broadcast %48 : vector<1x512xi1> to vector<4x512xi1>
    %50 = arith.select %49, %46, %47 : vector<4x512xi1>, vector<4x512xf32>
    %51 = vector.shape_cast %17 : vector<1x512xi1> to vector<1x512xi1>
    %52 = vector.broadcast %51 : vector<1x512xi1> to vector<4x512xi1>
    %53 = arith.select %52, %47, %46 : vector<4x512xi1>, vector<4x512xf32>
    %c3 = arith.constant 3 : index
    %c0_17 = arith.constant 0 : index
    %c0_18 = arith.constant 0 : index
    %54 = vector.load %arg1[%c3, %c0_17, %c0_18] : memref<9x4x4xf32, #tpu.memory_space<vmem>>, vector<1x4x4xf32>
    %55 = vector.shape_cast %54 : vector<1x4x4xf32> to vector<4x4xf32>
    %cst_19 = arith.constant dense<0.000000e+00> : vector<4x512xf32>
    %56 = tpu.matmul %55, %50, %cst_19 {dimension_numbers = #tpu.dot_dimension_numbers<[1], [0], [0], [1], [0, 0, 1, 1], [], []>} : vector<4x4xf32>, vector<4x512xf32>, vector<4x512xf32> -> vector<4x512xf32>
    %57 = arith.addf %45, %56 : vector<4x512xf32>
    %c4 = arith.constant 4 : index
    %c0_20 = arith.constant 0 : index
    %c0_21 = arith.constant 0 : index
    %58 = vector.load %arg1[%c4, %c0_20, %c0_21] : memref<9x4x4xf32, #tpu.memory_space<vmem>>, vector<1x4x4xf32>
    %59 = vector.shape_cast %58 : vector<1x4x4xf32> to vector<4x4xf32>
    %cst_22 = arith.constant dense<0.000000e+00> : vector<4x512xf32>
    %60 = tpu.matmul %59, %0, %cst_22 {dimension_numbers = #tpu.dot_dimension_numbers<[1], [0], [0], [1], [0, 0, 1, 1], [], []>} : vector<4x4xf32>, vector<4x512xf32>, vector<4x512xf32> -> vector<4x512xf32>
    %61 = arith.addf %57, %60 : vector<4x512xf32>
    %c5 = arith.constant 5 : index
    %c0_23 = arith.constant 0 : index
    %c0_24 = arith.constant 0 : index
    %62 = vector.load %arg1[%c5, %c0_23, %c0_24] : memref<9x4x4xf32, #tpu.memory_space<vmem>>, vector<1x4x4xf32>
    %63 = vector.shape_cast %62 : vector<1x4x4xf32> to vector<4x4xf32>
    %cst_25 = arith.constant dense<0.000000e+00> : vector<4x512xf32>
    %64 = tpu.matmul %63, %53, %cst_25 {dimension_numbers = #tpu.dot_dimension_numbers<[1], [0], [0], [1], [0, 0, 1, 1], [], []>} : vector<4x4xf32>, vector<4x512xf32>, vector<4x512xf32> -> vector<4x512xf32>
    %65 = arith.addf %61, %64 : vector<4x512xf32>
    %c511_i32_26 = arith.constant 511 : i32
    %66 = tpu.dynamic_rotate %26 by %c511_i32_26 dim 1 : vector<4x512xf32>, i32 -> vector<4x512xf32>
    %c1_i32_27 = arith.constant 1 : i32
    %67 = tpu.dynamic_rotate %26 by %c1_i32_27 dim 1 : vector<4x512xf32>, i32 -> vector<4x512xf32>
    %68 = vector.shape_cast %15 : vector<1x512xi1> to vector<1x512xi1>
    %69 = vector.broadcast %68 : vector<1x512xi1> to vector<4x512xi1>
    %70 = arith.select %69, %66, %67 : vector<4x512xi1>, vector<4x512xf32>
    %71 = vector.shape_cast %17 : vector<1x512xi1> to vector<1x512xi1>
    %72 = vector.broadcast %71 : vector<1x512xi1> to vector<4x512xi1>
    %73 = arith.select %72, %67, %66 : vector<4x512xi1>, vector<4x512xf32>
    %c6 = arith.constant 6 : index
    %c0_28 = arith.constant 0 : index
    %c0_29 = arith.constant 0 : index
    %74 = vector.load %arg1[%c6, %c0_28, %c0_29] : memref<9x4x4xf32, #tpu.memory_space<vmem>>, vector<1x4x4xf32>
    %75 = vector.shape_cast %74 : vector<1x4x4xf32> to vector<4x4xf32>
    %cst_30 = arith.constant dense<0.000000e+00> : vector<4x512xf32>
    %76 = tpu.matmul %75, %70, %cst_30 {dimension_numbers = #tpu.dot_dimension_numbers<[1], [0], [0], [1], [0, 0, 1, 1], [], []>} : vector<4x4xf32>, vector<4x512xf32>, vector<4x512xf32> -> vector<4x512xf32>
    %77 = arith.addf %65, %76 : vector<4x512xf32>
    %c7 = arith.constant 7 : index
    %c0_31 = arith.constant 0 : index
    %c0_32 = arith.constant 0 : index
    %78 = vector.load %arg1[%c7, %c0_31, %c0_32] : memref<9x4x4xf32, #tpu.memory_space<vmem>>, vector<1x4x4xf32>
    %79 = vector.shape_cast %78 : vector<1x4x4xf32> to vector<4x4xf32>
    %cst_33 = arith.constant dense<0.000000e+00> : vector<4x512xf32>
    %80 = tpu.matmul %79, %26, %cst_33 {dimension_numbers = #tpu.dot_dimension_numbers<[1], [0], [0], [1], [0, 0, 1, 1], [], []>} : vector<4x4xf32>, vector<4x512xf32>, vector<4x512xf32> -> vector<4x512xf32>
    %81 = arith.addf %77, %80 : vector<4x512xf32>
    %c8 = arith.constant 8 : index
    %c0_34 = arith.constant 0 : index
    %c0_35 = arith.constant 0 : index
    %82 = vector.load %arg1[%c8, %c0_34, %c0_35] : memref<9x4x4xf32, #tpu.memory_space<vmem>>, vector<1x4x4xf32>
    %83 = vector.shape_cast %82 : vector<1x4x4xf32> to vector<4x4xf32>
    %cst_36 = arith.constant dense<0.000000e+00> : vector<4x512xf32>
    %84 = tpu.matmul %83, %73, %cst_36 {dimension_numbers = #tpu.dot_dimension_numbers<[1], [0], [0], [1], [0, 0, 1, 1], [], []>} : vector<4x4xf32>, vector<4x512xf32>, vector<4x512xf32> -> vector<4x512xf32>
    %85 = arith.addf %81, %84 : vector<4x512xf32>
    %86 = vector.broadcast %18 : vector<4x1xf32> to vector<4x512xf32>
    %87 = arith.addf %85, %86 : vector<4x512xf32>
    %c0_i32_37 = arith.constant 0 : i32
    %88 = vector.broadcast %c0_i32_37 : i32 to vector<1x512xi32>
    %89 = arith.cmpi eq, %3, %88 : vector<1x512xi32>
    %90 = arith.extui %89 : vector<1x512xi1> to vector<1x512xi32>
    %91 = arith.sitofp %90 : vector<1x512xi32> to vector<1x512xf32>
    %92 = vector.broadcast %91 : vector<1x512xf32> to vector<4x512xf32>
    %93 = arith.mulf %87, %92 : vector<4x512xf32>
    %cst_38 = arith.constant dense<0.000000e+00> : vector<4xf32>
    %94 = vector.multi_reduction <add>, %93, %cst_38 [1] : vector<4x512xf32> to vector<4xf32>
    %95 = vector.shape_cast %94 : vector<4xf32> to vector<4x1xf32>
    %cst_39 = arith.constant 3.906250e-03 : f32
    %96 = vector.broadcast %cst_39 : f32 to vector<4x1xf32>
    %97 = arith.mulf %95, %96 : vector<4x1xf32>
    %98 = arith.mulf %93, %93 : vector<4x512xf32>
    %cst_40 = arith.constant dense<0.000000e+00> : vector<4xf32>
    %99 = vector.multi_reduction <add>, %98, %cst_40 [1] : vector<4x512xf32> to vector<4xf32>
    %100 = vector.shape_cast %99 : vector<4xf32> to vector<4x1xf32>
    %cst_41 = arith.constant 3.906250e-03 : f32
    %101 = vector.broadcast %cst_41 : f32 to vector<4x1xf32>
    %102 = arith.mulf %100, %101 : vector<4x1xf32>
    %103 = arith.mulf %97, %97 : vector<4x1xf32>
    %104 = arith.subf %102, %103 : vector<4x1xf32>
    %cst_42 = arith.constant 9.99999974E-6 : f32
    %105 = vector.broadcast %cst_42 : f32 to vector<4x1xf32>
    %106 = arith.addf %104, %105 : vector<4x1xf32>
    %107 = math.rsqrt %106 : vector<4x1xf32>
    %108 = vector.broadcast %97 : vector<4x1xf32> to vector<4x512xf32>
    %109 = vector.broadcast %91 : vector<1x512xf32> to vector<4x512xf32>
    %110 = arith.mulf %108, %109 : vector<4x512xf32>
    %111 = vector.broadcast %107 : vector<4x1xf32> to vector<4x512xf32>
    %112 = vector.broadcast %91 : vector<1x512xf32> to vector<4x512xf32>
    %113 = arith.mulf %111, %112 : vector<4x512xf32>
    %c1_i32_43 = arith.constant 1 : i32
    %114 = vector.broadcast %c1_i32_43 : i32 to vector<1x512xi32>
    %115 = arith.cmpi eq, %3, %114 : vector<1x512xi32>
    %116 = arith.extui %115 : vector<1x512xi1> to vector<1x512xi32>
    %117 = arith.sitofp %116 : vector<1x512xi32> to vector<1x512xf32>
    %118 = vector.broadcast %117 : vector<1x512xf32> to vector<4x512xf32>
    %119 = arith.mulf %87, %118 : vector<4x512xf32>
    %cst_44 = arith.constant dense<0.000000e+00> : vector<4xf32>
    %120 = vector.multi_reduction <add>, %119, %cst_44 [1] : vector<4x512xf32> to vector<4xf32>
    %121 = vector.shape_cast %120 : vector<4xf32> to vector<4x1xf32>
    %cst_45 = arith.constant 3.906250e-03 : f32
    %122 = vector.broadcast %cst_45 : f32 to vector<4x1xf32>
    %123 = arith.mulf %121, %122 : vector<4x1xf32>
    %124 = arith.mulf %119, %119 : vector<4x512xf32>
    %cst_46 = arith.constant dense<0.000000e+00> : vector<4xf32>
    %125 = vector.multi_reduction <add>, %124, %cst_46 [1] : vector<4x512xf32> to vector<4xf32>
    %126 = vector.shape_cast %125 : vector<4xf32> to vector<4x1xf32>
    %cst_47 = arith.constant 3.906250e-03 : f32
    %127 = vector.broadcast %cst_47 : f32 to vector<4x1xf32>
    %128 = arith.mulf %126, %127 : vector<4x1xf32>
    %129 = arith.mulf %123, %123 : vector<4x1xf32>
    %130 = arith.subf %128, %129 : vector<4x1xf32>
    %cst_48 = arith.constant 9.99999974E-6 : f32
    %131 = vector.broadcast %cst_48 : f32 to vector<4x1xf32>
    %132 = arith.addf %130, %131 : vector<4x1xf32>
    %133 = math.rsqrt %132 : vector<4x1xf32>
    %134 = vector.broadcast %123 : vector<4x1xf32> to vector<4x512xf32>
    %135 = vector.broadcast %117 : vector<1x512xf32> to vector<4x512xf32>
    %136 = arith.mulf %134, %135 : vector<4x512xf32>
    %137 = vector.broadcast %133 : vector<4x1xf32> to vector<4x512xf32>
    %138 = vector.broadcast %117 : vector<1x512xf32> to vector<4x512xf32>
    %139 = arith.mulf %137, %138 : vector<4x512xf32>
    %140 = arith.addf %110, %136 : vector<4x512xf32>
    %141 = arith.addf %113, %139 : vector<4x512xf32>
    %142 = arith.subf %87, %140 : vector<4x512xf32>
    %143 = arith.mulf %142, %141 : vector<4x512xf32>
    %cst_49 = arith.constant 0.000000e+00 : f32
    %144 = vector.broadcast %cst_49 : f32 to vector<4x512xf32>
    %145 = arith.maximumf %143, %144 : vector<4x512xf32>
    %c0_50 = arith.constant 0 : index
    %c0_51 = arith.constant 0 : index
    %146 = vector.load %arg4[%c0_50, %c0_51] : memref<4x1xf32, #tpu.memory_space<vmem>>, vector<4x1xf32>
    %c496_i32_52 = arith.constant 496 : i32
    %147 = tpu.dynamic_rotate %145 by %c496_i32_52 dim 1 : vector<4x512xf32>, i32 -> vector<4x512xf32>
    %c16_i32_53 = arith.constant 16 : i32
    %148 = tpu.dynamic_rotate %145 by %c16_i32_53 dim 1 : vector<4x512xf32>, i32 -> vector<4x512xf32>
    %149 = vector.shape_cast %11 : vector<1x512xi1> to vector<1x512xi1>
    %150 = vector.broadcast %149 : vector<1x512xi1> to vector<4x512xi1>
    %151 = arith.select %150, %147, %148 : vector<4x512xi1>, vector<4x512xf32>
    %152 = vector.shape_cast %13 : vector<1x512xi1> to vector<1x512xi1>
    %153 = vector.broadcast %152 : vector<1x512xi1> to vector<4x512xi1>
    %154 = arith.select %153, %148, %147 : vector<4x512xi1>, vector<4x512xf32>
    %c511_i32_54 = arith.constant 511 : i32
    %155 = tpu.dynamic_rotate %151 by %c511_i32_54 dim 1 : vector<4x512xf32>, i32 -> vector<4x512xf32>
    %c1_i32_55 = arith.constant 1 : i32
    %156 = tpu.dynamic_rotate %151 by %c1_i32_55 dim 1 : vector<4x512xf32>, i32 -> vector<4x512xf32>
    %157 = vector.shape_cast %15 : vector<1x512xi1> to vector<1x512xi1>
    %158 = vector.broadcast %157 : vector<1x512xi1> to vector<4x512xi1>
    %159 = arith.select %158, %155, %156 : vector<4x512xi1>, vector<4x512xf32>
    %160 = vector.shape_cast %17 : vector<1x512xi1> to vector<1x512xi1>
    %161 = vector.broadcast %160 : vector<1x512xi1> to vector<4x512xi1>
    %162 = arith.select %161, %156, %155 : vector<4x512xi1>, vector<4x512xf32>
    %c0_56 = arith.constant 0 : index
    %c0_57 = arith.constant 0 : index
    %c0_58 = arith.constant 0 : index
    %163 = vector.load %arg3[%c0_56, %c0_57, %c0_58] : memref<9x4x4xf32, #tpu.memory_space<vmem>>, vector<1x4x4xf32>
    %164 = vector.shape_cast %163 : vector<1x4x4xf32> to vector<4x4xf32>
    %cst_59 = arith.constant dense<0.000000e+00> : vector<4x512xf32>
    %165 = tpu.matmul %164, %159, %cst_59 {dimension_numbers = #tpu.dot_dimension_numbers<[1], [0], [0], [1], [0, 0, 1, 1], [], []>} : vector<4x4xf32>, vector<4x512xf32>, vector<4x512xf32> -> vector<4x512xf32>
    %c1_60 = arith.constant 1 : index
    %c0_61 = arith.constant 0 : index
    %c0_62 = arith.constant 0 : index
    %166 = vector.load %arg3[%c1_60, %c0_61, %c0_62] : memref<9x4x4xf32, #tpu.memory_space<vmem>>, vector<1x4x4xf32>
    %167 = vector.shape_cast %166 : vector<1x4x4xf32> to vector<4x4xf32>
    %cst_63 = arith.constant dense<0.000000e+00> : vector<4x512xf32>
    %168 = tpu.matmul %167, %151, %cst_63 {dimension_numbers = #tpu.dot_dimension_numbers<[1], [0], [0], [1], [0, 0, 1, 1], [], []>} : vector<4x4xf32>, vector<4x512xf32>, vector<4x512xf32> -> vector<4x512xf32>
    %169 = arith.addf %165, %168 : vector<4x512xf32>
    %c2_64 = arith.constant 2 : index
    %c0_65 = arith.constant 0 : index
    %c0_66 = arith.constant 0 : index
    %170 = vector.load %arg3[%c2_64, %c0_65, %c0_66] : memref<9x4x4xf32, #tpu.memory_space<vmem>>, vector<1x4x4xf32>
    %171 = vector.shape_cast %170 : vector<1x4x4xf32> to vector<4x4xf32>
    %cst_67 = arith.constant dense<0.000000e+00> : vector<4x512xf32>
    %172 = tpu.matmul %171, %162, %cst_67 {dimension_numbers = #tpu.dot_dimension_numbers<[1], [0], [0], [1], [0, 0, 1, 1], [], []>} : vector<4x4xf32>, vector<4x512xf32>, vector<4x512xf32> -> vector<4x512xf32>
    %173 = arith.addf %169, %172 : vector<4x512xf32>
    %c511_i32_68 = arith.constant 511 : i32
    %174 = tpu.dynamic_rotate %145 by %c511_i32_68 dim 1 : vector<4x512xf32>, i32 -> vector<4x512xf32>
    %c1_i32_69 = arith.constant 1 : i32
    %175 = tpu.dynamic_rotate %145 by %c1_i32_69 dim 1 : vector<4x512xf32>, i32 -> vector<4x512xf32>
    %176 = vector.shape_cast %15 : vector<1x512xi1> to vector<1x512xi1>
    %177 = vector.broadcast %176 : vector<1x512xi1> to vector<4x512xi1>
    %178 = arith.select %177, %174, %175 : vector<4x512xi1>, vector<4x512xf32>
    %179 = vector.shape_cast %17 : vector<1x512xi1> to vector<1x512xi1>
    %180 = vector.broadcast %179 : vector<1x512xi1> to vector<4x512xi1>
    %181 = arith.select %180, %175, %174 : vector<4x512xi1>, vector<4x512xf32>
    %c3_70 = arith.constant 3 : index
    %c0_71 = arith.constant 0 : index
    %c0_72 = arith.constant 0 : index
    %182 = vector.load %arg3[%c3_70, %c0_71, %c0_72] : memref<9x4x4xf32, #tpu.memory_space<vmem>>, vector<1x4x4xf32>
    %183 = vector.shape_cast %182 : vector<1x4x4xf32> to vector<4x4xf32>
    %cst_73 = arith.constant dense<0.000000e+00> : vector<4x512xf32>
    %184 = tpu.matmul %183, %178, %cst_73 {dimension_numbers = #tpu.dot_dimension_numbers<[1], [0], [0], [1], [0, 0, 1, 1], [], []>} : vector<4x4xf32>, vector<4x512xf32>, vector<4x512xf32> -> vector<4x512xf32>
    %185 = arith.addf %173, %184 : vector<4x512xf32>
    %c4_74 = arith.constant 4 : index
    %c0_75 = arith.constant 0 : index
    %c0_76 = arith.constant 0 : index
    %186 = vector.load %arg3[%c4_74, %c0_75, %c0_76] : memref<9x4x4xf32, #tpu.memory_space<vmem>>, vector<1x4x4xf32>
    %187 = vector.shape_cast %186 : vector<1x4x4xf32> to vector<4x4xf32>
    %cst_77 = arith.constant dense<0.000000e+00> : vector<4x512xf32>
    %188 = tpu.matmul %187, %145, %cst_77 {dimension_numbers = #tpu.dot_dimension_numbers<[1], [0], [0], [1], [0, 0, 1, 1], [], []>} : vector<4x4xf32>, vector<4x512xf32>, vector<4x512xf32> -> vector<4x512xf32>
    %189 = arith.addf %185, %188 : vector<4x512xf32>
    %c5_78 = arith.constant 5 : index
    %c0_79 = arith.constant 0 : index
    %c0_80 = arith.constant 0 : index
    %190 = vector.load %arg3[%c5_78, %c0_79, %c0_80] : memref<9x4x4xf32, #tpu.memory_space<vmem>>, vector<1x4x4xf32>
    %191 = vector.shape_cast %190 : vector<1x4x4xf32> to vector<4x4xf32>
    %cst_81 = arith.constant dense<0.000000e+00> : vector<4x512xf32>
    %192 = tpu.matmul %191, %181, %cst_81 {dimension_numbers = #tpu.dot_dimension_numbers<[1], [0], [0], [1], [0, 0, 1, 1], [], []>} : vector<4x4xf32>, vector<4x512xf32>, vector<4x512xf32> -> vector<4x512xf32>
    %193 = arith.addf %189, %192 : vector<4x512xf32>
    %c511_i32_82 = arith.constant 511 : i32
    %194 = tpu.dynamic_rotate %154 by %c511_i32_82 dim 1 : vector<4x512xf32>, i32 -> vector<4x512xf32>
    %c1_i32_83 = arith.constant 1 : i32
    %195 = tpu.dynamic_rotate %154 by %c1_i32_83 dim 1 : vector<4x512xf32>, i32 -> vector<4x512xf32>
    %196 = vector.shape_cast %15 : vector<1x512xi1> to vector<1x512xi1>
    %197 = vector.broadcast %196 : vector<1x512xi1> to vector<4x512xi1>
    %198 = arith.select %197, %194, %195 : vector<4x512xi1>, vector<4x512xf32>
    %199 = vector.shape_cast %17 : vector<1x512xi1> to vector<1x512xi1>
    %200 = vector.broadcast %199 : vector<1x512xi1> to vector<4x512xi1>
    %201 = arith.select %200, %195, %194 : vector<4x512xi1>, vector<4x512xf32>
    %c6_84 = arith.constant 6 : index
    %c0_85 = arith.constant 0 : index
    %c0_86 = arith.constant 0 : index
    %202 = vector.load %arg3[%c6_84, %c0_85, %c0_86] : memref<9x4x4xf32, #tpu.memory_space<vmem>>, vector<1x4x4xf32>
    %203 = vector.shape_cast %202 : vector<1x4x4xf32> to vector<4x4xf32>
    %cst_87 = arith.constant dense<0.000000e+00> : vector<4x512xf32>
    %204 = tpu.matmul %203, %198, %cst_87 {dimension_numbers = #tpu.dot_dimension_numbers<[1], [0], [0], [1], [0, 0, 1, 1], [], []>} : vector<4x4xf32>, vector<4x512xf32>, vector<4x512xf32> -> vector<4x512xf32>
    %205 = arith.addf %193, %204 : vector<4x512xf32>
    %c7_88 = arith.constant 7 : index
    %c0_89 = arith.constant 0 : index
    %c0_90 = arith.constant 0 : index
    %206 = vector.load %arg3[%c7_88, %c0_89, %c0_90] : memref<9x4x4xf32, #tpu.memory_space<vmem>>, vector<1x4x4xf32>
    %207 = vector.shape_cast %206 : vector<1x4x4xf32> to vector<4x4xf32>
    %cst_91 = arith.constant dense<0.000000e+00> : vector<4x512xf32>
    %208 = tpu.matmul %207, %154, %cst_91 {dimension_numbers = #tpu.dot_dimension_numbers<[1], [0], [0], [1], [0, 0, 1, 1], [], []>} : vector<4x4xf32>, vector<4x512xf32>, vector<4x512xf32> -> vector<4x512xf32>
    %209 = arith.addf %205, %208 : vector<4x512xf32>
    %c8_92 = arith.constant 8 : index
    %c0_93 = arith.constant 0 : index
    %c0_94 = arith.constant 0 : index
    %210 = vector.load %arg3[%c8_92, %c0_93, %c0_94] : memref<9x4x4xf32, #tpu.memory_space<vmem>>, vector<1x4x4xf32>
    %211 = vector.shape_cast %210 : vector<1x4x4xf32> to vector<4x4xf32>
    %cst_95 = arith.constant dense<0.000000e+00> : vector<4x512xf32>
    %212 = tpu.matmul %211, %201, %cst_95 {dimension_numbers = #tpu.dot_dimension_numbers<[1], [0], [0], [1], [0, 0, 1, 1], [], []>} : vector<4x4xf32>, vector<4x512xf32>, vector<4x512xf32> -> vector<4x512xf32>
    %213 = arith.addf %209, %212 : vector<4x512xf32>
    %214 = vector.broadcast %146 : vector<4x1xf32> to vector<4x512xf32>
    %215 = arith.addf %213, %214 : vector<4x512xf32>
    %c0_i32_96 = arith.constant 0 : i32
    %216 = vector.broadcast %c0_i32_96 : i32 to vector<1x512xi32>
    %217 = arith.cmpi eq, %3, %216 : vector<1x512xi32>
    %218 = arith.extui %217 : vector<1x512xi1> to vector<1x512xi32>
    %219 = arith.sitofp %218 : vector<1x512xi32> to vector<1x512xf32>
    %220 = vector.broadcast %219 : vector<1x512xf32> to vector<4x512xf32>
    %221 = arith.mulf %215, %220 : vector<4x512xf32>
    %cst_97 = arith.constant dense<0.000000e+00> : vector<4xf32>
    %222 = vector.multi_reduction <add>, %221, %cst_97 [1] : vector<4x512xf32> to vector<4xf32>
    %223 = vector.shape_cast %222 : vector<4xf32> to vector<4x1xf32>
    %cst_98 = arith.constant 3.906250e-03 : f32
    %224 = vector.broadcast %cst_98 : f32 to vector<4x1xf32>
    %225 = arith.mulf %223, %224 : vector<4x1xf32>
    %226 = arith.mulf %221, %221 : vector<4x512xf32>
    %cst_99 = arith.constant dense<0.000000e+00> : vector<4xf32>
    %227 = vector.multi_reduction <add>, %226, %cst_99 [1] : vector<4x512xf32> to vector<4xf32>
    %228 = vector.shape_cast %227 : vector<4xf32> to vector<4x1xf32>
    %cst_100 = arith.constant 3.906250e-03 : f32
    %229 = vector.broadcast %cst_100 : f32 to vector<4x1xf32>
    %230 = arith.mulf %228, %229 : vector<4x1xf32>
    %231 = arith.mulf %225, %225 : vector<4x1xf32>
    %232 = arith.subf %230, %231 : vector<4x1xf32>
    %cst_101 = arith.constant 9.99999974E-6 : f32
    %233 = vector.broadcast %cst_101 : f32 to vector<4x1xf32>
    %234 = arith.addf %232, %233 : vector<4x1xf32>
    %235 = math.rsqrt %234 : vector<4x1xf32>
    %236 = vector.broadcast %225 : vector<4x1xf32> to vector<4x512xf32>
    %237 = vector.broadcast %219 : vector<1x512xf32> to vector<4x512xf32>
    %238 = arith.mulf %236, %237 : vector<4x512xf32>
    %239 = vector.broadcast %235 : vector<4x1xf32> to vector<4x512xf32>
    %240 = vector.broadcast %219 : vector<1x512xf32> to vector<4x512xf32>
    %241 = arith.mulf %239, %240 : vector<4x512xf32>
    %c1_i32_102 = arith.constant 1 : i32
    %242 = vector.broadcast %c1_i32_102 : i32 to vector<1x512xi32>
    %243 = arith.cmpi eq, %3, %242 : vector<1x512xi32>
    %244 = arith.extui %243 : vector<1x512xi1> to vector<1x512xi32>
    %245 = arith.sitofp %244 : vector<1x512xi32> to vector<1x512xf32>
    %246 = vector.broadcast %245 : vector<1x512xf32> to vector<4x512xf32>
    %247 = arith.mulf %215, %246 : vector<4x512xf32>
    %cst_103 = arith.constant dense<0.000000e+00> : vector<4xf32>
    %248 = vector.multi_reduction <add>, %247, %cst_103 [1] : vector<4x512xf32> to vector<4xf32>
    %249 = vector.shape_cast %248 : vector<4xf32> to vector<4x1xf32>
    %cst_104 = arith.constant 3.906250e-03 : f32
    %250 = vector.broadcast %cst_104 : f32 to vector<4x1xf32>
    %251 = arith.mulf %249, %250 : vector<4x1xf32>
    %252 = arith.mulf %247, %247 : vector<4x512xf32>
    %cst_105 = arith.constant dense<0.000000e+00> : vector<4xf32>
    %253 = vector.multi_reduction <add>, %252, %cst_105 [1] : vector<4x512xf32> to vector<4xf32>
    %254 = vector.shape_cast %253 : vector<4xf32> to vector<4x1xf32>
    %cst_106 = arith.constant 3.906250e-03 : f32
    %255 = vector.broadcast %cst_106 : f32 to vector<4x1xf32>
    %256 = arith.mulf %254, %255 : vector<4x1xf32>
    %257 = arith.mulf %251, %251 : vector<4x1xf32>
    %258 = arith.subf %256, %257 : vector<4x1xf32>
    %cst_107 = arith.constant 9.99999974E-6 : f32
    %259 = vector.broadcast %cst_107 : f32 to vector<4x1xf32>
    %260 = arith.addf %258, %259 : vector<4x1xf32>
    %261 = math.rsqrt %260 : vector<4x1xf32>
    %262 = vector.broadcast %251 : vector<4x1xf32> to vector<4x512xf32>
    %263 = vector.broadcast %245 : vector<1x512xf32> to vector<4x512xf32>
    %264 = arith.mulf %262, %263 : vector<4x512xf32>
    %265 = vector.broadcast %261 : vector<4x1xf32> to vector<4x512xf32>
    %266 = vector.broadcast %245 : vector<1x512xf32> to vector<4x512xf32>
    %267 = arith.mulf %265, %266 : vector<4x512xf32>
    %268 = arith.addf %238, %264 : vector<4x512xf32>
    %269 = arith.addf %241, %267 : vector<4x512xf32>
    %270 = arith.subf %215, %268 : vector<4x512xf32>
    %271 = arith.mulf %270, %269 : vector<4x512xf32>
    %272 = arith.addf %0, %271 : vector<4x512xf32>
    %cst_108 = arith.constant 0.000000e+00 : f32
    %273 = vector.broadcast %cst_108 : f32 to vector<4x512xf32>
    %274 = arith.maximumf %272, %273 : vector<4x512xf32>
    %c0_109 = arith.constant 0 : index
    %c0_110 = arith.constant 0 : index
    %275 = vector.load %arg5[%c0_109, %c0_110] : memref<4x512xf32, #tpu.memory_space<vmem>>, vector<4x512xf32>
    tpu.vector_store %arg5[%c0_109, %c0_110], %274 {strides = array<i32>} : memref<4x512xf32, #tpu.memory_space<vmem>>, vector<4x512xf32>,
    return
  }
}

</mosaic_0001>

<llo_original>
// kernel: tpu_custom_call.1
$region0: #{tpu_custom_call.1}
  #allocation0 [shape = 'u32[]', space=smem, size = 0x4, offset = 0x4, fixed_abs, tag = 'smem constant byte address 0x4 - core index']
  #allocation1 [shape = 'u32[72,128]{1,0:T(1,128)}', space=vmem, size = 0x9000, scoped, tag = 'internal scratch']
  %s0 = inlined_call_operand.vmem [shape: f32[4,512], index: 0, kind: input, shape index: {}]
  %s1 = inlined_call_operand.vmem [shape: f32[9,4,4], index: 1, kind: input, shape index: {}]
  %s2 = inlined_call_operand.vmem [shape: f32[4,1], index: 2, kind: input, shape index: {}]
  %s3 = inlined_call_operand.vmem [shape: f32[9,4,4], index: 3, kind: input, shape index: {}]
  %s4 = inlined_call_operand.vmem [shape: f32[4,1], index: 4, kind: input, shape index: {}]
  %s5 = inlined_call_operand.hbm [shape: f32[4,512], index: 5, kind: output, shape index: {}]
  %s6 = sld [smem:[#allocation0]]
  $region30: #{tpu_custom_call.1} parent=0
    _
  %s8 = ssub.s32 1, %s6
  %s9 = scalar_select 0, %s8, %s6
  $region1: #{tpu_custom_call.1} parent=0
    #allocation2 [shape = 'u8[8192]{0}', space=vmem, size = 0x2000, scoped, tag = 'output window, operand 0, single buffered']
    #allocation3 [shape = 's32[1]{0}', space=sflag, size = 0x4, scoped, tag = 'scoped memory for tpu_custom_call.1']
    %10 = vsyncpa [#allocation3], 0
    // Predicated region
    $region2: #{tpu_custom_call.1} parent=1 // pred_check
      _
    $region3: #{tpu_custom_call.1} parent=1 // pred_check_branch
      %12 = sbr.rel (0) target = $region5
    $region4: #{tpu_custom_call.1} parent=1 // pred_region
      _
    $region5: #{tpu_custom_call.1} parent=1 // pred_fallthru
      _
    // Predicated region
    $region6: #{tpu_custom_call.1} parent=1 // pred_check
      _
    $region7: #{tpu_custom_call.1} parent=1 // pred_check_branch
      %14 = sbr.rel (0) target = $region9
    $region8: #{tpu_custom_call.1} parent=1 // pred_region
      _
    $region9: #{tpu_custom_call.1} parent=1 // pred_fallthru
      _
    // Predicated region
    $region10: #{tpu_custom_call.1} parent=1 // pred_check
      _
    $region11: #{tpu_custom_call.1} parent=1 // pred_check_branch
      %16 = sbr.rel (0) target = $region13
    $region12: #{tpu_custom_call.1} parent=1 // pred_region
      _
    $region13: #{tpu_custom_call.1} parent=1 // pred_fallthru
      _
    // Predicated region
    $region14: #{tpu_custom_call.1} parent=1 // pred_check
      _
    $region15: #{tpu_custom_call.1} parent=1 // pred_check_branch
      %18 = sbr.rel (0) target = $region17
    $region16: #{tpu_custom_call.1} parent=1 // pred_region
      _
    $region17: #{tpu_custom_call.1} parent=1 // pred_fallthru
      _
    // Predicated region
    $region18: #{tpu_custom_call.1} parent=1 // pred_check
      _
    $region19: #{tpu_custom_call.1} parent=1 // pred_check_branch
      %20 = sbr.rel (0) target = $region21
    $region20: #{tpu_custom_call.1} parent=1 // pred_region
      _
    $region21: #{tpu_custom_call.1} parent=1 // pred_fallthru
      _
    %v21 = vld [vmem:[%s0] sm:$0xff]
    %v22 = vld [vmem:[%s0 + $0x8] sm:$0xff]
    %v23 = vlaneseq
    %v24 = vand.u32 %v23, 127
    %v25 = vadd.s32 %v24, 128
    %v26 = vadd.s32 %v24, 256
    %v27 = vadd.s32 %v24, 384
    %v28 = vshra.s32 %v24, 8
    %v29 = vshra.s32 %v25, 8
    %v30 = vshra.s32 %v26, 8
    %v31 = vshra.s32 %v27, 8
    %v32 = vand.u32 %v24, 255
    %v33 = vand.u32 %v25, 255
    %v34 = vand.u32 %v26, 255
    %v35 = vand.u32 %v27, 255
    %v36 = vshra.s32 %v32, 4
    %v37 = vshra.s32 %v33, 4
    %v38 = vshra.s32 %v34, 4
    %v39 = vshra.s32 %v35, 4
    %v40 = vand.u32 %v32, 15
    %v41 = vand.u32 %v33, 15
    %v42 = vand.u32 %v34, 15
    %v43 = vand.u32 %v35, 15
    %vm44 = vcmp.eq.s32.totalorder %v36, 0
    %vm45 = vcmp.eq.s32.totalorder %v37, 0
    %vm46 = vcmp.eq.s32.totalorder %v38, 0
    %vm47 = vcmp.eq.s32.totalorder %v39, 0
    %vm48 = vcmp.eq.s32.totalorder %v36, 15
    %vm49 = vcmp.eq.s32.totalorder %v37, 15
    %vm50 = vcmp.eq.s32.totalorder %v38, 15
    %vm51 = vcmp.eq.s32.totalorder %v39, 15
    %vm52 = vcmp.eq.s32.totalorder %v40, 0
    %vm53 = vcmp.eq.s32.totalorder %v41, 0
    %vm54 = vcmp.eq.s32.totalorder %v42, 0
    %vm55 = vcmp.eq.s32.totalorder %v43, 0
    %vm56 = vcmp.eq.s32.totalorder %v40, 15
    %vm57 = vcmp.eq.s32.totalorder %v41, 15
    %vm58 = vcmp.eq.s32.totalorder %v42, 15
    %vm59 = vcmp.eq.s32.totalorder %v43, 15
    %v60 = vld [vmem:[%s2] sm:$0xf]
    %63 = vst [vmem:[#allocation1] ss:$2 sm:$0xff] %v21
    %s64 = scalar_lea.vmem [#allocation1], 16
    %65 = vst [vmem:[%s64] ss:$2 sm:$0xff] %v22
    %v66 = vld.sshfl [vmem:[#allocation1] sm:$0xff pattern:$0x75316420]
    %v67 = vld.sshfl [vmem:[#allocation1 + $0x8] sm:$0xff pattern:$0x75316420]
    %v68 = vld.sshfl [vmem:[#allocation1 + $0x10] sm:$0xff pattern:$0x75316420]
    %v69 = vld.sshfl [vmem:[#allocation1 + $0x18] sm:$0xff pattern:$0x75316420]
    %74 = vrot.lane.b32.xlu0 %v66, 112
    %v75 = vpop.permute.xlu0 %74
    %76 = vrot.lane.b32.xlu0 %v67, 112
    %v77 = vpop.permute.xlu0 %76
    %78 = vrot.lane.b32.xlu0 %v68, 112
    %v79 = vpop.permute.xlu0 %78
    %80 = vrot.lane.b32.xlu0 %v69, 112
    %v81 = vpop.permute.xlu0 %80
    %vm82 = vcmp.lt.s32.totalorder %v24, 112
    %v83 = vsel %vm82, %v79, %v81
    %v84 = vsel %vm82, %v77, %v79
    %v85 = vsel %vm82, %v75, %v77
    %v86 = vsel %vm82, %v81, %v75
    %87 = vst [vmem:[#allocation1] ss:$2 sm:$0xff] %v21
    %s88 = scalar_lea.vmem [#allocation1], 16
    %89 = vst [vmem:[%s88] ss:$2 sm:$0xff] %v22
    %v90 = vld.sshfl [vmem:[#allocation1] sm:$0xff pattern:$0x75316420]
    %v91 = vld.sshfl [vmem:[#allocation1 + $0x8] sm:$0xff pattern:$0x75316420]
    %v92 = vld.sshfl [vmem:[#allocation1 + $0x10] sm:$0xff pattern:$0x75316420]
    %v93 = vld.sshfl [vmem:[#allocation1 + $0x18] sm:$0xff pattern:$0x75316420]
    %98 = vrot.lane.b32.xlu0 %v90, 16
    %v99 = vpop.permute.xlu0 %98
    %100 = vrot.lane.b32.xlu0 %v91, 16
    %v101 = vpop.permute.xlu0 %100
    %102 = vrot.lane.b32.xlu0 %v92, 16
    %v103 = vpop.permute.xlu0 %102
    %104 = vrot.lane.b32.xlu0 %v93, 16
    %v105 = vpop.permute.xlu0 %104
    %vm106 = vcmp.lt.s32.totalorder %v24, 16
    %v107 = vsel %vm106, %v103, %v105
    %v108 = vsel %vm106, %v101, %v103
    %v109 = vsel %vm106, %v99, %v101
    %v110 = vsel %vm106, %v105, %v99
    %v111 = vsel %vm44, 1, 0
    %v112 = vsel %vm45, 1, 0
    %v113 = vsel %vm46, 1, 0
    %v114 = vsel %vm47, 1, 0
    %vm115 = vcmp.eq.s32.totalorder %v111, 1
    %vm116 = vcmp.eq.s32.totalorder %v112, 1
    %vm117 = vcmp.eq.s32.totalorder %v113, 1
    %vm118 = vcmp.eq.s32.totalorder %v114, 1
    %v119 = vsel %vm115, %v85, %v110
    %v120 = vsel %vm116, %v84, %v109
    %v121 = vsel %vm117, %v83, %v108
    %v122 = vsel %vm118, %v86, %v107
    %v123 = vsel %vm48, 1, 0
    %v124 = vsel %vm49, 1, 0
    %v125 = vsel %vm50, 1, 0
    %v126 = vsel %vm51, 1, 0
    %vm127 = vcmp.eq.s32.totalorder %v123, 1
    %vm128 = vcmp.eq.s32.totalorder %v124, 1
    %vm129 = vcmp.eq.s32.totalorder %v125, 1
    %vm130 = vcmp.eq.s32.totalorder %v126, 1
    %v131 = vsel %vm127, %v110, %v85
    %v132 = vsel %vm128, %v109, %v84
    %v133 = vsel %vm129, %v108, %v83
    %v134 = vsel %vm130, %v107, %v86
    %135 = vrot.lane.b32.xlu0 %v119, 127
    %v136 = vpop.permute.xlu0 %135
    %137 = vrot.lane.b32.xlu0 %v120, 127
    %v138 = vpop.permute.xlu0 %137
    %139 = vrot.lane.b32.xlu0 %v121, 127
    %v140 = vpop.permute.xlu0 %139
    %141 = vrot.lane.b32.xlu0 %v122, 127
    %v142 = vpop.permute.xlu0 %141
    %vm143 = vcmp.lt.s32.totalorder %v24, 127
    %v144 = vsel %vm143, %v140, %v142
    %v145 = vsel %vm143, %v138, %v140
    %v146 = vsel %vm143, %v136, %v138
    %v147 = vsel %vm143, %v142, %v136
    %148 = vrot.lane.b32.xlu0 %v119, 1
    %v149 = vpop.permute.xlu0 %148
    %150 = vrot.lane.b32.xlu0 %v120, 1
    %v151 = vpop.permute.xlu0 %150
    %152 = vrot.lane.b32.xlu0 %v121, 1
    %v153 = vpop.permute.xlu0 %152
    %154 = vrot.lane.b32.xlu0 %v122, 1
    %v155 = vpop.permute.xlu0 %154
    %vm156 = vcmp.lt.s32.totalorder %v24, 1
    %v157 = vsel %vm156, %v153, %v155
    %v158 = vsel %vm156, %v151, %v153
    %v159 = vsel %vm156, %v149, %v151
    %v160 = vsel %vm156, %v155, %v149
    %v161 = vsel %vm52, 1, 0
    %v162 = vsel %vm53, 1, 0
    %v163 = vsel %vm54, 1, 0
    %v164 = vsel %vm55, 1, 0
    %vm165 = vcmp.eq.s32.totalorder %v161, 1
    %vm166 = vcmp.eq.s32.totalorder %v162, 1
    %vm167 = vcmp.eq.s32.totalorder %v163, 1
    %vm168 = vcmp.eq.s32.totalorder %v164, 1
    %v169 = vsel %vm165, %v146, %v160
    %v170 = vsel %vm166, %v145, %v159
    %v171 = vsel %vm167, %v144, %v158
    %v172 = vsel %vm168, %v147, %v157
    %v173 = vsel %vm56, 1, 0
    %v174 = vsel %vm57, 1, 0
    %v175 = vsel %vm58, 1, 0
    %v176 = vsel %vm59, 1, 0
    %vm177 = vcmp.eq.s32.totalorder %v173, 1
    %vm178 = vcmp.eq.s32.totalorder %v174, 1
    %vm179 = vcmp.eq.s32.totalorder %v175, 1
    %vm180 = vcmp.eq.s32.totalorder %v176, 1
    %v181 = vsel %vm177, %v160, %v146
    %v182 = vsel %vm178, %v159, %v145
    %v183 = vsel %vm179, %v158, %v144
    %v184 = vsel %vm180, %v157, %v147
    %v185 = vld [vmem:[%s1] sm:$0xf]
    %s186 = scalar_lea.vmem %s1, 4
    %v187 = vld [vmem:[%s186] sm:$0xf]
    %vm188 = vcmask 31744
    %v190 = vsel %vm188, %v187, 0
    %vm192 = vcmask 1043456
    %v194 = vsel %vm192, %v119, 0
    %v197 = vsel %vm192, %v120, 0
    %v200 = vsel %vm192, %v121, 0
    %v203 = vsel %vm192, %v122, 0
    %205 = vmatpush.msra.mxu0 0.0
    %206 = vmatpush.msra.mxu0 0.0
    %207 = vmatpush.msra.mxu0 0.0
    %208 = vmatpush.msra.mxu0 0.0
    %209 = vmatpush.msra.mxu0 0.0
    %210 = vmatpush.msra.mxu0 0.0
    %211 = vmatpush.msra.mxu0 0.0
    %212 = vmatpush.msra.mxu0 0.0
    %213 = vmatpush.msra.mxu0 0.0
    %214 = vmatpush.msra.mxu0 0.0
    %215 = vmatpush.msra.mxu0 0.0
    %216 = vmatpush.msra.mxu0 0.0
    %217 = vmatpush.msra.mxu0 0.0
    %218 = vmatpush.msra.mxu0 0.0
    %219 = vmatpush.msra.mxu0 0.0
    %220 = vmatpush.msra.mxu0 %v194
    %221 = vmatmul.f32.gmra.mxu0 %v190
    %v222 = vpop.f32.mrf.mxu0
    %v223 = vadd.f32 0.0, %v222
    %224 = vdwg.mxu0
    %225 = vmatpush.msra.mxu0 0.0
    %226 = vmatpush.msra.mxu0 0.0
    %227 = vmatpush.msra.mxu0 0.0
    %228 = vmatpush.msra.mxu0 0.0
    %229 = vmatpush.msra.mxu0 0.0
    %230 = vmatpush.msra.mxu0 0.0
    %231 = vmatpush.msra.mxu0 0.0
    %232 = vmatpush.msra.mxu0 0.0
    %233 = vmatpush.msra.mxu0 0.0
    %234 = vmatpush.msra.mxu0 0.0
    %235 = vmatpush.msra.mxu0 0.0
    %236 = vmatpush.msra.mxu0 0.0
    %237 = vmatpush.msra.mxu0 0.0
    %238 = vmatpush.msra.mxu0 0.0
    %239 = vmatpush.msra.mxu0 0.0
    %240 = vmatpush.msra.mxu0 %v197
    %241 = vmatmul.f32.gmra.mxu0 %v190
    %v242 = vpop.f32.mrf.mxu0
    %v243 = vadd.f32 0.0, %v242
    %244 = vdwg.mxu0
    %245 = vmatpush.msra.mxu0 0.0
    %246 = vmatpush.msra.mxu0 0.0
    %247 = vmatpush.msra.mxu0 0.0
    %248 = vmatpush.msra.mxu0 0.0
    %249 = vmatpush.msra.mxu0 0.0
    %250 = vmatpush.msra.mxu0 0.0
    %251 = vmatpush.msra.mxu0 0.0
    %252 = vmatpush.msra.mxu0 0.0
    %253 = vmatpush.msra.mxu0 0.0
    %254 = vmatpush.msra.mxu0 0.0
    %255 = vmatpush.msra.mxu0 0.0
    %256 = vmatpush.msra.mxu0 0.0
    %257 = vmatpush.msra.mxu0 0.0
    %258 = vmatpush.msra.mxu0 0.0
    %259 = vmatpush.msra.mxu0 0.0
    %260 = vmatpush.msra.mxu0 %v200
    %261 = vmatmul.f32.gmra.mxu0 %v190
    %v262 = vpop.f32.mrf.mxu0
    %v263 = vadd.f32 0.0, %v262
    %264 = vdwg.mxu0
    %265 = vmatpush.msra.mxu0 0.0
    %266 = vmatpush.msra.mxu0 0.0
    %267 = vmatpush.msra.mxu0 0.0
    %268 = vmatpush.msra.mxu0 0.0
    %269 = vmatpush.msra.mxu0 0.0
    %270 = vmatpush.msra.mxu0 0.0
    %271 = vmatpush.msra.mxu0 0.0
    %272 = vmatpush.msra.mxu0 0.0
    %273 = vmatpush.msra.mxu0 0.0
    %274 = vmatpush.msra.mxu0 0.0
    %275 = vmatpush.msra.mxu0 0.0
    %276 = vmatpush.msra.mxu0 0.0
    %277 = vmatpush.msra.mxu0 0.0
    %278 = vmatpush.msra.mxu0 0.0
    %279 = vmatpush.msra.mxu0 0.0
    %280 = vmatpush.msra.mxu0 %v203
    %281 = vmatmul.f32.gmra.mxu0 %v190
    %v282 = vpop.f32.mrf.mxu0
    %v283 = vadd.f32 0.0, %v282
    %284 = vdwg.mxu0
    %v286 = vsel %vm188, %v185, 0
    %v289 = vsel %vm192, %v169, 0
    %v292 = vsel %vm192, %v170, 0
    %v295 = vsel %vm192, %v171, 0
    %v298 = vsel %vm192, %v172, 0
    %300 = vmatpush.msra.mxu0 0.0
    %301 = vmatpush.msra.mxu0 0.0
    %302 = vmatpush.msra.mxu0 0.0
    %303 = vmatpush.msra.mxu0 0.0
    %304 = vmatpush.msra.mxu0 0.0
    %305 = vmatpush.msra.mxu0 0.0
    %306 = vmatpush.msra.mxu0 0.0
    %307 = vmatpush.msra.mxu0 0.0
    %308 = vmatpush.msra.mxu0 0.0
    %309 = vmatpush.msra.mxu0 0.0
    %310 = vmatpush.msra.mxu0 0.0
    %311 = vmatpush.msra.mxu0 0.0
    %312 = vmatpush.msra.mxu0 0.0
    %313 = vmatpush.msra.mxu0 0.0
    %314 = vmatpush.msra.mxu0 0.0
    %315 = vmatpush.msra.mxu0 %v289
    %316 = vmatmul.f32.gmra.mxu0 %v286
    %v317 = vpop.f32.mrf.mxu0
    %v318 = vadd.f32 %v223, %v317
    %319 = vdwg.mxu0
    %320 = vmatpush.msra.mxu0 0.0
    %321 = vmatpush.msra.mxu0 0.0
    %322 = vmatpush.msra.mxu0 0.0
    %323 = vmatpush.msra.mxu0 0.0
    %324 = vmatpush.msra.mxu0 0.0
    %325 = vmatpush.msra.mxu0 0.0
    %326 = vmatpush.msra.mxu0 0.0
    %327 = vmatpush.msra.mxu0 0.0
    %328 = vmatpush.msra.mxu0 0.0
    %329 = vmatpush.msra.mxu0 0.0
    %330 = vmatpush.msra.mxu0 0.0
    %331 = vmatpush.msra.mxu0 0.0
    %332 = vmatpush.msra.mxu0 0.0
    %333 = vmatpush.msra.mxu0 0.0
    %334 = vmatpush.msra.mxu0 0.0
    %335 = vmatpush.msra.mxu0 %v292
    %336 = vmatmul.f32.gmra.mxu0 %v286
    %v337 = vpop.f32.mrf.mxu0
    %v338 = vadd.f32 %v243, %v337
    %339 = vdwg.mxu0
    %340 = vmatpush.msra.mxu0 0.0
    %341 = vmatpush.msra.mxu0 0.0
    %342 = vmatpush.msra.mxu0 0.0
    %343 = vmatpush.msra.mxu0 0.0
    %344 = vmatpush.msra.mxu0 0.0
    %345 = vmatpush.msra.mxu0 0.0
    %346 = vmatpush.msra.mxu0 0.0
    %347 = vmatpush.msra.mxu0 0.0
    %348 = vmatpush.msra.mxu0 0.0
    %349 = vmatpush.msra.mxu0 0.0
    %350 = vmatpush.msra.mxu0 0.0
    %351 = vmatpush.msra.mxu0 0.0
    %352 = vmatpush.msra.mxu0 0.0
    %353 = vmatpush.msra.mxu0 0.0
    %354 = vmatpush.msra.mxu0 0.0
    %355 = vmatpush.msra.mxu0 %v295
    %356 = vmatmul.f32.gmra.mxu0 %v286
    %v357 = vpop.f32.mrf.mxu0
    %v358 = vadd.f32 %v263, %v357
    %359 = vdwg.mxu0
    %360 = vmatpush.msra.mxu0 0.0
    %361 = vmatpush.msra.mxu0 0.0
    %362 = vmatpush.msra.mxu0 0.0
    %363 = vmatpush.msra.mxu0 0.0
    %364 = vmatpush.msra.mxu0 0.0
    %365 = vmatpush.msra.mxu0 0.0
    %366 = vmatpush.msra.mxu0 0.0
    %367 = vmatpush.msra.mxu0 0.0
    %368 = vmatpush.msra.mxu0 0.0
    %369 = vmatpush.msra.mxu0 0.0
    %370 = vmatpush.msra.mxu0 0.0
    %371 = vmatpush.msra.mxu0 0.0
    %372 = vmatpush.msra.mxu0 0.0
    %373 = vmatpush.msra.mxu0 0.0
    %374 = vmatpush.msra.mxu0 0.0
    %375 = vmatpush.msra.mxu0 %v298
    %376 = vmatmul.f32.gmra.mxu0 %v286
    %v377 = vpop.f32.mrf.mxu0
    %v378 = vadd.f32 %v283, %v377
    %379 = vdwg.mxu0
    %s380 = scalar_lea.vmem %s1, 8
    %v381 = vld [vmem:[%s380] sm:$0xf]
    %v383 = vsel %vm188, %v381, 0
    %v386 = vsel %vm192, %v181, 0
    %v389 = vsel %vm192, %v182, 0
    %v392 = vsel %vm192, %v183, 0
    %v395 = vsel %vm192, %v184, 0
    %397 = vmatpush.msra.mxu0 0.0
    %398 = vmatpush.msra.mxu0 0.0
    %399 = vmatpush.msra.mxu0 0.0
    %400 = vmatpush.msra.mxu0 0.0
    %401 = vmatpush.msra.mxu0 0.0
    %402 = vmatpush.msra.mxu0 0.0
    %403 = vmatpush.msra.mxu0 0.0
    %404 = vmatpush.msra.mxu0 0.0
    %405 = vmatpush.msra.mxu0 0.0
    %406 = vmatpush.msra.mxu0 0.0
    %407 = vmatpush.msra.mxu0 0.0
    %408 = vmatpush.msra.mxu0 0.0
    %409 = vmatpush.msra.mxu0 0.0
    %410 = vmatpush.msra.mxu0 0.0
    %411 = vmatpush.msra.mxu0 0.0
    %412 = vmatpush.msra.mxu0 %v386
    %413 = vmatmul.f32.gmra.mxu0 %v383
    %v414 = vpop.f32.mrf.mxu0
    %v415 = vadd.f32 0.0, %v414
    %416 = vdwg.mxu0
    %417 = vmatpush.msra.mxu0 0.0
    %418 = vmatpush.msra.mxu0 0.0
    %419 = vmatpush.msra.mxu0 0.0
    %420 = vmatpush.msra.mxu0 0.0
    %421 = vmatpush.msra.mxu0 0.0
    %422 = vmatpush.msra.mxu0 0.0
    %423 = vmatpush.msra.mxu0 0.0
    %424 = vmatpush.msra.mxu0 0.0
    %425 = vmatpush.msra.mxu0 0.0
    %426 = vmatpush.msra.mxu0 0.0
    %427 = vmatpush.msra.mxu0 0.0
    %428 = vmatpush.msra.mxu0 0.0
    %429 = vmatpush.msra.mxu0 0.0
    %430 = vmatpush.msra.mxu0 0.0
    %431 = vmatpush.msra.mxu0 0.0
    %432 = vmatpush.msra.mxu0 %v389
    %433 = vmatmul.f32.gmra.mxu0 %v383
    %v434 = vpop.f32.mrf.mxu0
    %v435 = vadd.f32 0.0, %v434
    %436 = vdwg.mxu0
    %437 = vmatpush.msra.mxu0 0.0
    %438 = vmatpush.msra.mxu0 0.0
    %439 = vmatpush.msra.mxu0 0.0
    %440 = vmatpush.msra.mxu0 0.0
    %441 = vmatpush.msra.mxu0 0.0
    %442 = vmatpush.msra.mxu0 0.0
    %443 = vmatpush.msra.mxu0 0.0
    %444 = vmatpush.msra.mxu0 0.0
    %445 = vmatpush.msra.mxu0 0.0
    %446 = vmatpush.msra.mxu0 0.0
    %447 = vmatpush.msra.mxu0 0.0
    %448 = vmatpush.msra.mxu0 0.0
    %449 = vmatpush.msra.mxu0 0.0
    %450 = vmatpush.msra.mxu0 0.0
    %451 = vmatpush.msra.mxu0 0.0
    %452 = vmatpush.msra.mxu0 %v392
    %453 = vmatmul.f32.gmra.mxu0 %v383
    %v454 = vpop.f32.mrf.mxu0
    %v455 = vadd.f32 0.0, %v454
    %456 = vdwg.mxu0
    %457 = vmatpush.msra.mxu0 0.0
    %458 = vmatpush.msra.mxu0 0.0
    %459 = vmatpush.msra.mxu0 0.0
    %460 = vmatpush.msra.mxu0 0.0
    %461 = vmatpush.msra.mxu0 0.0
    %462 = vmatpush.msra.mxu0 0.0
    %463 = vmatpush.msra.mxu0 0.0
    %464 = vmatpush.msra.mxu0 0.0
    %465 = vmatpush.msra.mxu0 0.0
    %466 = vmatpush.msra.mxu0 0.0
    %467 = vmatpush.msra.mxu0 0.0
    %468 = vmatpush.msra.mxu0 0.0
    %469 = vmatpush.msra.mxu0 0.0
    %470 = vmatpush.msra.mxu0 0.0
    %471 = vmatpush.msra.mxu0 0.0
    %472 = vmatpush.msra.mxu0 %v395
    %473 = vmatmul.f32.gmra.mxu0 %v383
    %v474 = vpop.f32.mrf.mxu0
    %v475 = vadd.f32 0.0, %v474
    %476 = vdwg.mxu0
    %v477 = vadd.f32 %v318, %v415
    %v478 = vadd.f32 %v338, %v435
    %v479 = vadd.f32 %v358, %v455
    %v480 = vadd.f32 %v378, %v475
    %481 = vst [vmem:[#allocation1] ss:$2 sm:$0xff] %v21
    %s482 = scalar_lea.vmem [#allocation1], 16
    %483 = vst [vmem:[%s482] ss:$2 sm:$0xff] %v22
    %v484 = vld.sshfl [vmem:[#allocation1] sm:$0xff pattern:$0x75316420]
    %v485 = vld.sshfl [vmem:[#allocation1 + $0x8] sm:$0xff pattern:$0x75316420]
    %v486 = vld.sshfl [vmem:[#allocation1 + $0x10] sm:$0xff pattern:$0x75316420]
    %v487 = vld.sshfl [vmem:[#allocation1 + $0x18] sm:$0xff pattern:$0x75316420]
    %492 = vrot.lane.b32.xlu0 %v484, 127
    %v493 = vpop.permute.xlu0 %492
    %494 = vrot.lane.b32.xlu0 %v485, 127
    %v495 = vpop.permute.xlu0 %494
    %496 = vrot.lane.b32.xlu0 %v486, 127
    %v497 = vpop.permute.xlu0 %496
    %498 = vrot.lane.b32.xlu0 %v487, 127
    %v499 = vpop.permute.xlu0 %498
    %v500 = vsel %vm143, %v497, %v499
    %v501 = vsel %vm143, %v495, %v497
    %v502 = vsel %vm143, %v493, %v495
    %v503 = vsel %vm143, %v499, %v493
    %504 = vst [vmem:[#allocation1] ss:$2 sm:$0xff] %v21
    %s505 = scalar_lea.vmem [#allocation1], 16
    %506 = vst [vmem:[%s505] ss:$2 sm:$0xff] %v22
    %v507 = vld.sshfl [vmem:[#allocation1] sm:$0xff pattern:$0x75316420]
    %v508 = vld.sshfl [vmem:[#allocation1 + $0x8] sm:$0xff pattern:$0x75316420]
    %v509 = vld.sshfl [vmem:[#allocation1 + $0x10] sm:$0xff pattern:$0x75316420]
    %v510 = vld.sshfl [vmem:[#allocation1 + $0x18] sm:$0xff pattern:$0x75316420]
    %515 = vrot.lane.b32.xlu0 %v507, 1
    %v516 = vpop.permute.xlu0 %515
    %517 = vrot.lane.b32.xlu0 %v508, 1
    %v518 = vpop.permute.xlu0 %517
    %519 = vrot.lane.b32.xlu0 %v509, 1
    %v520 = vpop.permute.xlu0 %519
    %521 = vrot.lane.b32.xlu0 %v510, 1
    %v522 = vpop.permute.xlu0 %521
    %v523 = vsel %vm156, %v520, %v522
    %v524 = vsel %vm156, %v518, %v520
    %v525 = vsel %vm156, %v516, %v518
    %v526 = vsel %vm156, %v522, %v516
    %v527 = vsel %vm165, %v502, %v526
    %v528 = vsel %vm166, %v501, %v525
    %v529 = vsel %vm167, %v500, %v524
    %v530 = vsel %vm168, %v503, %v523
    %v531 = vsel %vm177, %v526, %v502
    %v532 = vsel %vm178, %v525, %v501
    %v533 = vsel %vm179, %v524, %v500
    %v534 = vsel %vm180, %v523, %v503
    %s535 = scalar_lea.vmem %s1, 12
    %v536 = vld [vmem:[%s535] sm:$0xf]
    %v538 = vsel %vm188, %v536, 0
    %v541 = vsel %vm192, %v527, 0
    %v544 = vsel %vm192, %v528, 0
    %v547 = vsel %vm192, %v529, 0
    %v550 = vsel %vm192, %v530, 0
    %552 = vmatpush.msra.mxu0 0.0
    %553 = vmatpush.msra.mxu0 0.0
    %554 = vmatpush.msra.mxu0 0.0
    %555 = vmatpush.msra.mxu0 0.0
    %556 = vmatpush.msra.mxu0 0.0
    %557 = vmatpush.msra.mxu0 0.0
    %558 = vmatpush.msra.mxu0 0.0
    %559 = vmatpush.msra.mxu0 0.0
    %560 = vmatpush.msra.mxu0 0.0
    %561 = vmatpush.msra.mxu0 0.0
    %562 = vmatpush.msra.mxu0 0.0
    %563 = vmatpush.msra.mxu0 0.0
    %564 = vmatpush.msra.mxu0 0.0
    %565 = vmatpush.msra.mxu0 0.0
    %566 = vmatpush.msra.mxu0 0.0
    %567 = vmatpush.msra.mxu0 %v541
    %568 = vmatmul.f32.gmra.mxu0 %v538
    %v569 = vpop.f32.mrf.mxu0
    %v570 = vadd.f32 0.0, %v569
    %571 = vdwg.mxu0
    %572 = vmatpush.msra.mxu0 0.0
    %573 = vmatpush.msra.mxu0 0.0
    %574 = vmatpush.msra.mxu0 0.0
    %575 = vmatpush.msra.mxu0 0.0
    %576 = vmatpush.msra.mxu0 0.0
    %577 = vmatpush.msra.mxu0 0.0
    %578 = vmatpush.msra.mxu0 0.0
    %579 = vmatpush.msra.mxu0 0.0
    %580 = vmatpush.msra.mxu0 0.0
    %581 = vmatpush.msra.mxu0 0.0
    %582 = vmatpush.msra.mxu0 0.0
    %583 = vmatpush.msra.mxu0 0.0
    %584 = vmatpush.msra.mxu0 0.0
    %585 = vmatpush.msra.mxu0 0.0
    %586 = vmatpush.msra.mxu0 0.0
    %587 = vmatpush.msra.mxu0 %v544
    %588 = vmatmul.f32.gmra.mxu0 %v538
    %v589 = vpop.f32.mrf.mxu0
    %v590 = vadd.f32 0.0, %v589
    %591 = vdwg.mxu0
    %592 = vmatpush.msra.mxu0 0.0
    %593 = vmatpush.msra.mxu0 0.0
    %594 = vmatpush.msra.mxu0 0.0
    %595 = vmatpush.msra.mxu0 0.0
    %596 = vmatpush.msra.mxu0 0.0
    %597 = vmatpush.msra.mxu0 0.0
    %598 = vmatpush.msra.mxu0 0.0
    %599 = vmatpush.msra.mxu0 0.0
    %600 = vmatpush.msra.mxu0 0.0
    %601 = vmatpush.msra.mxu0 0.0
    %602 = vmatpush.msra.mxu0 0.0
    %603 = vmatpush.msra.mxu0 0.0
    %604 = vmatpush.msra.mxu0 0.0
    %605 = vmatpush.msra.mxu0 0.0
    %606 = vmatpush.msra.mxu0 0.0
    %607 = vmatpush.msra.mxu0 %v547
    %608 = vmatmul.f32.gmra.mxu0 %v538
    %v609 = vpop.f32.mrf.mxu0
    %v610 = vadd.f32 0.0, %v609
    %611 = vdwg.mxu0
    %612 = vmatpush.msra.mxu0 0.0
    %613 = vmatpush.msra.mxu0 0.0
    %614 = vmatpush.msra.mxu0 0.0
    %615 = vmatpush.msra.mxu0 0.0
    %616 = vmatpush.msra.mxu0 0.0
    %617 = vmatpush.msra.mxu0 0.0
    %618 = vmatpush.msra.mxu0 0.0
    %619 = vmatpush.msra.mxu0 0.0
    %620 = vmatpush.msra.mxu0 0.0
    %621 = vmatpush.msra.mxu0 0.0
    %622 = vmatpush.msra.mxu0 0.0
    %623 = vmatpush.msra.mxu0 0.0
    %624 = vmatpush.msra.mxu0 0.0
    %625 = vmatpush.msra.mxu0 0.0
    %626 = vmatpush.msra.mxu0 0.0
    %627 = vmatpush.msra.mxu0 %v550
    %628 = vmatmul.f32.gmra.mxu0 %v538
    %v629 = vpop.f32.mrf.mxu0
    %v630 = vadd.f32 0.0, %v629
    %631 = vdwg.mxu0
    %v632 = vadd.f32 %v477, %v570
    %v633 = vadd.f32 %v478, %v590
    %v634 = vadd.f32 %v479, %v610
    %v635 = vadd.f32 %v480, %v630
    %s636 = scalar_lea.vmem %s1, 16
    %v637 = vld [vmem:[%s636] sm:$0xf]
    %638 = vst [vmem:[#allocation1] ss:$2 sm:$0xff] %v21
    %s639 = scalar_lea.vmem [#allocation1], 16
    %640 = vst [vmem:[%s639] ss:$2 sm:$0xff] %v22
    %v641 = vld.sshfl [vmem:[#allocation1] sm:$0xff pattern:$0x75316420]
    %v642 = vld.sshfl [vmem:[#allocation1 + $0x8] sm:$0xff pattern:$0x75316420]
    %v643 = vld.sshfl [vmem:[#allocation1 + $0x10] sm:$0xff pattern:$0x75316420]
    %v644 = vld.sshfl [vmem:[#allocation1 + $0x18] sm:$0xff pattern:$0x75316420]
    %v646 = vsel %vm188, %v637, 0
    %v648 = vsel %vm192, %v641, 0
    %v650 = vsel %vm192, %v642, 0
    %v652 = vsel %vm192, %v643, 0
    %v654 = vsel %vm192, %v644, 0
    %656 = vmatpush.msra.mxu0 0.0
    %657 = vmatpush.msra.mxu0 0.0
    %658 = vmatpush.msra.mxu0 0.0
    %659 = vmatpush.msra.mxu0 0.0
    %660 = vmatpush.msra.mxu0 0.0
    %661 = vmatpush.msra.mxu0 0.0
    %662 = vmatpush.msra.mxu0 0.0
    %663 = vmatpush.msra.mxu0 0.0
    %664 = vmatpush.msra.mxu0 0.0
    %665 = vmatpush.msra.mxu0 0.0
    %666 = vmatpush.msra.mxu0 0.0
    %667 = vmatpush.msra.mxu0 0.0
    %668 = vmatpush.msra.mxu0 0.0
    %669 = vmatpush.msra.mxu0 0.0
    %670 = vmatpush.msra.mxu0 0.0
    %671 = vmatpush.msra.mxu0 %v648
    %672 = vmatmul.f32.gmra.mxu0 %v646
    %v673 = vpop.f32.mrf.mxu0
    %v674 = vadd.f32 0.0, %v673
    %675 = vdwg.mxu0
    %676 = vmatpush.msra.mxu0 0.0
    %677 = vmatpush.msra.mxu0 0.0
    %678 = vmatpush.msra.mxu0 0.0
    %679 = vmatpush.msra.mxu0 0.0
    %680 = vmatpush.msra.mxu0 0.0
    %681 = vmatpush.msra.mxu0 0.0
    %682 = vmatpush.msra.mxu0 0.0
    %683 = vmatpush.msra.mxu0 0.0
    %684 = vmatpush.msra.mxu0 0.0
    %685 = vmatpush.msra.mxu0 0.0
    %686 = vmatpush.msra.mxu0 0.0
    %687 = vmatpush.msra.mxu0 0.0
    %688 = vmatpush.msra.mxu0 0.0
    %689 = vmatpush.msra.mxu0 0.0
    %690 = vmatpush.msra.mxu0 0.0
    %691 = vmatpush.msra.mxu0 %v650
    %692 = vmatmul.f32.gmra.mxu0 %v646
    %v693 = vpop.f32.mrf.mxu0
    %v694 = vadd.f32 0.0, %v693
    %695 = vdwg.mxu0
    %696 = vmatpush.msra.mxu0 0.0
    %697 = vmatpush.msra.mxu0 0.0
    %698 = vmatpush.msra.mxu0 0.0
    %699 = vmatpush.msra.mxu0 0.0
    %700 = vmatpush.msra.mxu0 0.0
    %701 = vmatpush.msra.mxu0 0.0
    %702 = vmatpush.msra.mxu0 0.0
    %703 = vmatpush.msra.mxu0 0.0
    %704 = vmatpush.msra.mxu0 0.0
    %705 = vmatpush.msra.mxu0 0.0
    %706 = vmatpush.msra.mxu0 0.0
    %707 = vmatpush.msra.mxu0 0.0
    %708 = vmatpush.msra.mxu0 0.0
    %709 = vmatpush.msra.mxu0 0.0
    %710 = vmatpush.msra.mxu0 0.0
    %711 = vmatpush.msra.mxu0 %v652
    %712 = vmatmul.f32.gmra.mxu0 %v646
    %v713 = vpop.f32.mrf.mxu0
    %v714 = vadd.f32 0.0, %v713
    %715 = vdwg.mxu0
    %716 = vmatpush.msra.mxu0 0.0
    %717 = vmatpush.msra.mxu0 0.0
    %718 = vmatpush.msra.mxu0 0.0
    %719 = vmatpush.msra.mxu0 0.0
    %720 = vmatpush.msra.mxu0 0.0
    %721 = vmatpush.msra.mxu0 0.0
    %722 = vmatpush.msra.mxu0 0.0
    %723 = vmatpush.msra.mxu0 0.0
    %724 = vmatpush.msra.mxu0 0.0
    %725 = vmatpush.msra.mxu0 0.0
    %726 = vmatpush.msra.mxu0 0.0
    %727 = vmatpush.msra.mxu0 0.0
    %728 = vmatpush.msra.mxu0 0.0
    %729 = vmatpush.msra.mxu0 0.0
    %730 = vmatpush.msra.mxu0 0.0
    %731 = vmatpush.msra.mxu0 %v654
    %732 = vmatmul.f32.gmra.mxu0 %v646
    %v733 = vpop.f32.mrf.mxu0
    %v734 = vadd.f32 0.0, %v733
    %735 = vdwg.mxu0
    %v736 = vadd.f32 %v632, %v674
    %v737 = vadd.f32 %v633, %v694
    %v738 = vadd.f32 %v634, %v714
    %v739 = vadd.f32 %v635, %v734
    %s740 = scalar_lea.vmem %s1, 20
    %v741 = vld [vmem:[%s740] sm:$0xf]
    %v743 = vsel %vm188, %v741, 0
    %v746 = vsel %vm192, %v531, 0
    %v749 = vsel %vm192, %v532, 0
    %v752 = vsel %vm192, %v533, 0
    %v755 = vsel %vm192, %v534, 0
    %757 = vmatpush.msra.mxu0 0.0
    %758 = vmatpush.msra.mxu0 0.0
    %759 = vmatpush.msra.mxu0 0.0
    %760 = vmatpush.msra.mxu0 0.0
    %761 = vmatpush.msra.mxu0 0.0
    %762 = vmatpush.msra.mxu0 0.0
    %763 = vmatpush.msra.mxu0 0.0
    %764 = vmatpush.msra.mxu0 0.0
    %765 = vmatpush.msra.mxu0 0.0
    %766 = vmatpush.msra.mxu0 0.0
    %767 = vmatpush.msra.mxu0 0.0
    %768 = vmatpush.msra.mxu0 0.0
    %769 = vmatpush.msra.mxu0 0.0
    %770 = vmatpush.msra.mxu0 0.0
    %771 = vmatpush.msra.mxu0 0.0
    %772 = vmatpush.msra.mxu0 %v746
    %773 = vmatmul.f32.gmra.mxu0 %v743
    %v774 = vpop.f32.mrf.mxu0
    %v775 = vadd.f32 0.0, %v774
    %776 = vdwg.mxu0
    %777 = vmatpush.msra.mxu0 0.0
    %778 = vmatpush.msra.mxu0 0.0
    %779 = vmatpush.msra.mxu0 0.0
    %780 = vmatpush.msra.mxu0 0.0
    %781 = vmatpush.msra.mxu0 0.0
    %782 = vmatpush.msra.mxu0 0.0
    %783 = vmatpush.msra.mxu0 0.0
    %784 = vmatpush.msra.mxu0 0.0
    %785 = vmatpush.msra.mxu0 0.0
    %786 = vmatpush.msra.mxu0 0.0
    %787 = vmatpush.msra.mxu0 0.0
    %788 = vmatpush.msra.mxu0 0.0
    %789 = vmatpush.msra.mxu0 0.0
    %790 = vmatpush.msra.mxu0 0.0
    %791 = vmatpush.msra.mxu0 0.0
    %792 = vmatpush.msra.mxu0 %v749
    %793 = vmatmul.f32.gmra.mxu0 %v743
    %v794 = vpop.f32.mrf.mxu0
    %v795 = vadd.f32 0.0, %v794
    %796 = vdwg.mxu0
    %797 = vmatpush.msra.mxu0 0.0
    %798 = vmatpush.msra.mxu0 0.0
    %799 = vmatpush.msra.mxu0 0.0
    %800 = vmatpush.msra.mxu0 0.0
    %801 = vmatpush.msra.mxu0 0.0
    %802 = vmatpush.msra.mxu0 0.0
    %803 = vmatpush.msra.mxu0 0.0
    %804 = vmatpush.msra.mxu0 0.0
    %805 = vmatpush.msra.mxu0 0.0
    %806 = vmatpush.msra.mxu0 0.0
    %807 = vmatpush.msra.mxu0 0.0
    %808 = vmatpush.msra.mxu0 0.0
    %809 = vmatpush.msra.mxu0 0.0
    %810 = vmatpush.msra.mxu0 0.0
    %811 = vmatpush.msra.mxu0 0.0
    %812 = vmatpush.msra.mxu0 %v752
    %813 = vmatmul.f32.gmra.mxu0 %v743
    %v814 = vpop.f32.mrf.mxu0
    %v815 = vadd.f32 0.0, %v814
    %816 = vdwg.mxu0
    %817 = vmatpush.msra.mxu0 0.0
    %818 = vmatpush.msra.mxu0 0.0
    %819 = vmatpush.msra.mxu0 0.0
    %820 = vmatpush.msra.mxu0 0.0
    %821 = vmatpush.msra.mxu0 0.0
    %822 = vmatpush.msra.mxu0 0.0
    %823 = vmatpush.msra.mxu0 0.0
    %824 = vmatpush.msra.mxu0 0.0
    %825 = vmatpush.msra.mxu0 0.0
    %826 = vmatpush.msra.mxu0 0.0
    %827 = vmatpush.msra.mxu0 0.0
    %828 = vmatpush.msra.mxu0 0.0
    %829 = vmatpush.msra.mxu0 0.0
    %830 = vmatpush.msra.mxu0 0.0
    %831 = vmatpush.msra.mxu0 0.0
    %832 = vmatpush.msra.mxu0 %v755
    %833 = vmatmul.f32.gmra.mxu0 %v743
    %v834 = vpop.f32.mrf.mxu0
    %v835 = vadd.f32 0.0, %v834
    %836 = vdwg.mxu0
    %v837 = vadd.f32 %v736, %v775
    %v838 = vadd.f32 %v737, %v795
    %v839 = vadd.f32 %v738, %v815
    %v840 = vadd.f32 %v739, %v835
    %841 = vrot.lane.b32.xlu0 %v131, 127
    %v842 = vpop.permute.xlu0 %841
    %843 = vrot.lane.b32.xlu0 %v132, 127
    %v844 = vpop.permute.xlu0 %843
    %845 = vrot.lane.b32.xlu0 %v133, 127
    %v846 = vpop.permute.xlu0 %845
    %847 = vrot.lane.b32.xlu0 %v134, 127
    %v848 = vpop.permute.xlu0 %847
    %v849 = vsel %vm143, %v846, %v848
    %v850 = vsel %vm143, %v844, %v846
    %v851 = vsel %vm143, %v842, %v844
    %v852 = vsel %vm143, %v848, %v842
    %853 = vrot.lane.b32.xlu0 %v131, 1
    %v854 = vpop.permute.xlu0 %853
    %855 = vrot.lane.b32.xlu0 %v132, 1
    %v856 = vpop.permute.xlu0 %855
    %857 = vrot.lane.b32.xlu0 %v133, 1
    %v858 = vpop.permute.xlu0 %857
    %859 = vrot.lane.b32.xlu0 %v134, 1
    %v860 = vpop.permute.xlu0 %859
    %v861 = vsel %vm156, %v858, %v860
    %v862 = vsel %vm156, %v856, %v858
    %v863 = vsel %vm156, %v854, %v856
    %v864 = vsel %vm156, %v860, %v854
    %v865 = vsel %vm165, %v851, %v864
    %v866 = vsel %vm166, %v850, %v863
    %v867 = vsel %vm167, %v849, %v862
    %v868 = vsel %vm168, %v852, %v861
    %v869 = vsel %vm177, %v864, %v851
    %v870 = vsel %vm178, %v863, %v850
    %v871 = vsel %vm179, %v862, %v849
    %v872 = vsel %vm180, %v861, %v852
    %s873 = scalar_lea.vmem %s1, 24
    %v874 = vld [vmem:[%s873] sm:$0xf]
    %v876 = vsel %vm188, %v874, 0
    %v879 = vsel %vm192, %v865, 0
    %v882 = vsel %vm192, %v866, 0
    %v885 = vsel %vm192, %v867, 0
    %v888 = vsel %vm192, %v868, 0
    %890 = vmatpush.msra.mxu0 0.0
    %891 = vmatpush.msra.mxu0 0.0
    %892 = vmatpush.msra.mxu0 0.0
    %893 = vmatpush.msra.mxu0 0.0
    %894 = vmatpush.msra.mxu0 0.0
    %895 = vmatpush.msra.mxu0 0.0
    %896 = vmatpush.msra.mxu0 0.0
    %897 = vmatpush.msra.mxu0 0.0
    %898 = vmatpush.msra.mxu0 0.0
    %899 = vmatpush.msra.mxu0 0.0
    %900 = vmatpush.msra.mxu0 0.0
    %901 = vmatpush.msra.mxu0 0.0
    %902 = vmatpush.msra.mxu0 0.0
    %903 = vmatpush.msra.mxu0 0.0
    %904 = vmatpush.msra.mxu0 0.0
    %905 = vmatpush.msra.mxu0 %v879
    %906 = vmatmul.f32.gmra.mxu0 %v876
    %v907 = vpop.f32.mrf.mxu0
    %v908 = vadd.f32 0.0, %v907
    %909 = vdwg.mxu0
    %910 = vmatpush.msra.mxu0 0.0
    %911 = vmatpush.msra.mxu0 0.0
    %912 = vmatpush.msra.mxu0 0.0
    %913 = vmatpush.msra.mxu0 0.0
    %914 = vmatpush.msra.mxu0 0.0
    %915 = vmatpush.msra.mxu0 0.0
    %916 = vmatpush.msra.mxu0 0.0
    %917 = vmatpush.msra.mxu0 0.0
    %918 = vmatpush.msra.mxu0 0.0
    %919 = vmatpush.msra.mxu0 0.0
    %920 = vmatpush.msra.mxu0 0.0
    %921 = vmatpush.msra.mxu0 0.0
    %922 = vmatpush.msra.mxu0 0.0
    %923 = vmatpush.msra.mxu0 0.0
    %924 = vmatpush.msra.mxu0 0.0
    %925 = vmatpush.msra.mxu0 %v882
    %926 = vmatmul.f32.gmra.mxu0 %v876
    %v927 = vpop.f32.mrf.mxu0
    %v928 = vadd.f32 0.0, %v927
    %929 = vdwg.mxu0
    %930 = vmatpush.msra.mxu0 0.0
    %931 = vmatpush.msra.mxu0 0.0
    %932 = vmatpush.msra.mxu0 0.0
    %933 = vmatpush.msra.mxu0 0.0
    %934 = vmatpush.msra.mxu0 0.0
    %935 = vmatpush.msra.mxu0 0.0
    %936 = vmatpush.msra.mxu0 0.0
    %937 = vmatpush.msra.mxu0 0.0
    %938 = vmatpush.msra.mxu0 0.0
    %939 = vmatpush.msra.mxu0 0.0
    %940 = vmatpush.msra.mxu0 0.0
    %941 = vmatpush.msra.mxu0 0.0
    %942 = vmatpush.msra.mxu0 0.0
    %943 = vmatpush.msra.mxu0 0.0
    %944 = vmatpush.msra.mxu0 0.0
    %945 = vmatpush.msra.mxu0 %v885
    %946 = vmatmul.f32.gmra.mxu0 %v876
    %v947 = vpop.f32.mrf.mxu0
    %v948 = vadd.f32 0.0, %v947
    %949 = vdwg.mxu0
    %950 = vmatpush.msra.mxu0 0.0
    %951 = vmatpush.msra.mxu0 0.0
    %952 = vmatpush.msra.mxu0 0.0
    %953 = vmatpush.msra.mxu0 0.0
    %954 = vmatpush.msra.mxu0 0.0
    %955 = vmatpush.msra.mxu0 0.0
    %956 = vmatpush.msra.mxu0 0.0
    %957 = vmatpush.msra.mxu0 0.0
    %958 = vmatpush.msra.mxu0 0.0
    %959 = vmatpush.msra.mxu0 0.0
    %960 = vmatpush.msra.mxu0 0.0
    %961 = vmatpush.msra.mxu0 0.0
    %962 = vmatpush.msra.mxu0 0.0
    %963 = vmatpush.msra.mxu0 0.0
    %964 = vmatpush.msra.mxu0 0.0
    %965 = vmatpush.msra.mxu0 %v888
    %966 = vmatmul.f32.gmra.mxu0 %v876
    %v967 = vpop.f32.mrf.mxu0
    %v968 = vadd.f32 0.0, %v967
    %969 = vdwg.mxu0
    %v970 = vadd.f32 %v837, %v908
    %v971 = vadd.f32 %v838, %v928
    %v972 = vadd.f32 %v839, %v948
    %v973 = vadd.f32 %v840, %v968
    %s974 = scalar_lea.vmem %s1, 28
    %v975 = vld [vmem:[%s974] sm:$0xf]
    %v977 = vsel %vm188, %v975, 0
    %v980 = vsel %vm192, %v131, 0
    %v983 = vsel %vm192, %v132, 0
    %v986 = vsel %vm192, %v133, 0
    %v989 = vsel %vm192, %v134, 0
    %991 = vmatpush.msra.mxu0 0.0
    %992 = vmatpush.msra.mxu0 0.0
    %993 = vmatpush.msra.mxu0 0.0
    %994 = vmatpush.msra.mxu0 0.0
    %995 = vmatpush.msra.mxu0 0.0
    %996 = vmatpush.msra.mxu0 0.0
    %997 = vmatpush.msra.mxu0 0.0
    %998 = vmatpush.msra.mxu0 0.0
    %999 = vmatpush.msra.mxu0 0.0
    %1000 = vmatpush.msra.mxu0 0.0
    %1001 = vmatpush.msra.mxu0 0.0
    %1002 = vmatpush.msra.mxu0 0.0
    %1003 = vmatpush.msra.mxu0 0.0
    %1004 = vmatpush.msra.mxu0 0.0
    %1005 = vmatpush.msra.mxu0 0.0
    %1006 = vmatpush.msra.mxu0 %v980
    %1007 = vmatmul.f32.gmra.mxu0 %v977
    %v1008 = vpop.f32.mrf.mxu0
    %v1009 = vadd.f32 0.0, %v1008
    %1010 = vdwg.mxu0
    %1011 = vmatpush.msra.mxu0 0.0
    %1012 = vmatpush.msra.mxu0 0.0
    %1013 = vmatpush.msra.mxu0 0.0
    %1014 = vmatpush.msra.mxu0 0.0
    %1015 = vmatpush.msra.mxu0 0.0
    %1016 = vmatpush.msra.mxu0 0.0
    %1017 = vmatpush.msra.mxu0 0.0
    %1018 = vmatpush.msra.mxu0 0.0
    %1019 = vmatpush.msra.mxu0 0.0
    %1020 = vmatpush.msra.mxu0 0.0
    %1021 = vmatpush.msra.mxu0 0.0
    %1022 = vmatpush.msra.mxu0 0.0
    %1023 = vmatpush.msra.mxu0 0.0
    %1024 = vmatpush.msra.mxu0 0.0
    %1025 = vmatpush.msra.mxu0 0.0
    %1026 = vmatpush.msra.mxu0 %v983
    %1027 = vmatmul.f32.gmra.mxu0 %v977
    %v1028 = vpop.f32.mrf.mxu0
    %v1029 = vadd.f32 0.0, %v1028
    %1030 = vdwg.mxu0
    %1031 = vmatpush.msra.mxu0 0.0
    %1032 = vmatpush.msra.mxu0 0.0
    %1033 = vmatpush.msra.mxu0 0.0
    %1034 = vmatpush.msra.mxu0 0.0
    %1035 = vmatpush.msra.mxu0 0.0
    %1036 = vmatpush.msra.mxu0 0.0
    %1037 = vmatpush.msra.mxu0 0.0
    %1038 = vmatpush.msra.mxu0 0.0
    %1039 = vmatpush.msra.mxu0 0.0
    %1040 = vmatpush.msra.mxu0 0.0
    %1041 = vmatpush.msra.mxu0 0.0
    %1042 = vmatpush.msra.mxu0 0.0
    %1043 = vmatpush.msra.mxu0 0.0
    %1044 = vmatpush.msra.mxu0 0.0
    %1045 = vmatpush.msra.mxu0 0.0
    %1046 = vmatpush.msra.mxu0 %v986
    %1047 = vmatmul.f32.gmra.mxu0 %v977
    %v1048 = vpop.f32.mrf.mxu0
    %v1049 = vadd.f32 0.0, %v1048
    %1050 = vdwg.mxu0
    %1051 = vmatpush.msra.mxu0 0.0
    %1052 = vmatpush.msra.mxu0 0.0
    %1053 = vmatpush.msra.mxu0 0.0
    %1054 = vmatpush.msra.mxu0 0.0
    %1055 = vmatpush.msra.mxu0 0.0
    %1056 = vmatpush.msra.mxu0 0.0
    %1057 = vmatpush.msra.mxu0 0.0
    %1058 = vmatpush.msra.mxu0 0.0
    %1059 = vmatpush.msra.mxu0 0.0
    %1060 = vmatpush.msra.mxu0 0.0
    %1061 = vmatpush.msra.mxu0 0.0
    %1062 = vmatpush.msra.mxu0 0.0
    %1063 = vmatpush.msra.mxu0 0.0
    %1064 = vmatpush.msra.mxu0 0.0
    %1065 = vmatpush.msra.mxu0 0.0
    %1066 = vmatpush.msra.mxu0 %v989
    %1067 = vmatmul.f32.gmra.mxu0 %v977
    %v1068 = vpop.f32.mrf.mxu0
    %v1069 = vadd.f32 0.0, %v1068
    %1070 = vdwg.mxu0
    %v1071 = vadd.f32 %v970, %v1009
    %v1072 = vadd.f32 %v971, %v1029
    %v1073 = vadd.f32 %v972, %v1049
    %v1074 = vadd.f32 %v973, %v1069
    %s1075 = scalar_lea.vmem %s1, 32
    %v1076 = vld [vmem:[%s1075] sm:$0xf]
    %v1078 = vsel %vm188, %v1076, 0
    %v1081 = vsel %vm192, %v869, 0
    %v1084 = vsel %vm192, %v870, 0
    %v1087 = vsel %vm192, %v871, 0
    %v1090 = vsel %vm192, %v872, 0
    %1092 = vmatpush.msra.mxu0 0.0
    %1093 = vmatpush.msra.mxu0 0.0
    %1094 = vmatpush.msra.mxu0 0.0
    %1095 = vmatpush.msra.mxu0 0.0
    %1096 = vmatpush.msra.mxu0 0.0
    %1097 = vmatpush.msra.mxu0 0.0
    %1098 = vmatpush.msra.mxu0 0.0
    %1099 = vmatpush.msra.mxu0 0.0
    %1100 = vmatpush.msra.mxu0 0.0
    %1101 = vmatpush.msra.mxu0 0.0
    %1102 = vmatpush.msra.mxu0 0.0
    %1103 = vmatpush.msra.mxu0 0.0
    %1104 = vmatpush.msra.mxu0 0.0
    %1105 = vmatpush.msra.mxu0 0.0
    %1106 = vmatpush.msra.mxu0 0.0
    %1107 = vmatpush.msra.mxu0 %v1081
    %1108 = vmatmul.f32.gmra.mxu0 %v1078
    %v1109 = vpop.f32.mrf.mxu0
    %v1110 = vadd.f32 0.0, %v1109
    %1111 = vdwg.mxu0
    %1112 = vmatpush.msra.mxu0 0.0
    %1113 = vmatpush.msra.mxu0 0.0
    %1114 = vmatpush.msra.mxu0 0.0
    %1115 = vmatpush.msra.mxu0 0.0
    %1116 = vmatpush.msra.mxu0 0.0
    %1117 = vmatpush.msra.mxu0 0.0
    %1118 = vmatpush.msra.mxu0 0.0
    %1119 = vmatpush.msra.mxu0 0.0
    %1120 = vmatpush.msra.mxu0 0.0
    %1121 = vmatpush.msra.mxu0 0.0
    %1122 = vmatpush.msra.mxu0 0.0
    %1123 = vmatpush.msra.mxu0 0.0
    %1124 = vmatpush.msra.mxu0 0.0
    %1125 = vmatpush.msra.mxu0 0.0
    %1126 = vmatpush.msra.mxu0 0.0
    %1127 = vmatpush.msra.mxu0 %v1084
    %1128 = vmatmul.f32.gmra.mxu0 %v1078
    %v1129 = vpop.f32.mrf.mxu0
    %v1130 = vadd.f32 0.0, %v1129
    %1131 = vdwg.mxu0
    %1132 = vmatpush.msra.mxu0 0.0
    %1133 = vmatpush.msra.mxu0 0.0
    %1134 = vmatpush.msra.mxu0 0.0
    %1135 = vmatpush.msra.mxu0 0.0
    %1136 = vmatpush.msra.mxu0 0.0
    %1137 = vmatpush.msra.mxu0 0.0
    %1138 = vmatpush.msra.mxu0 0.0
    %1139 = vmatpush.msra.mxu0 0.0
    %1140 = vmatpush.msra.mxu0 0.0
    %1141 = vmatpush.msra.mxu0 0.0
    %1142 = vmatpush.msra.mxu0 0.0
    %1143 = vmatpush.msra.mxu0 0.0
    %1144 = vmatpush.msra.mxu0 0.0
    %1145 = vmatpush.msra.mxu0 0.0
    %1146 = vmatpush.msra.mxu0 0.0
    %1147 = vmatpush.msra.mxu0 %v1087
    %1148 = vmatmul.f32.gmra.mxu0 %v1078
    %v1149 = vpop.f32.mrf.mxu0
    %v1150 = vadd.f32 0.0, %v1149
    %1151 = vdwg.mxu0
    %1152 = vmatpush.msra.mxu0 0.0
    %1153 = vmatpush.msra.mxu0 0.0
    %1154 = vmatpush.msra.mxu0 0.0
    %1155 = vmatpush.msra.mxu0 0.0
    %1156 = vmatpush.msra.mxu0 0.0
    %1157 = vmatpush.msra.mxu0 0.0
    %1158 = vmatpush.msra.mxu0 0.0
    %1159 = vmatpush.msra.mxu0 0.0
    %1160 = vmatpush.msra.mxu0 0.0
    %1161 = vmatpush.msra.mxu0 0.0
    %1162 = vmatpush.msra.mxu0 0.0
    %1163 = vmatpush.msra.mxu0 0.0
    %1164 = vmatpush.msra.mxu0 0.0
    %1165 = vmatpush.msra.mxu0 0.0
    %1166 = vmatpush.msra.mxu0 0.0
    %1167 = vmatpush.msra.mxu0 %v1090
    %1168 = vmatmul.f32.gmra.mxu0 %v1078
    %v1169 = vpop.f32.mrf.mxu0
    %v1170 = vadd.f32 0.0, %v1169
    %1171 = vdwg.mxu0
    %v1172 = vadd.f32 %v1071, %v1110
    %v1173 = vadd.f32 %v1072, %v1130
    %v1174 = vadd.f32 %v1073, %v1150
    %v1175 = vadd.f32 %v1074, %v1170
    %1177 = vset.pattern.permute.xlu0 0
    %1178 = vperm.xlu0 %1177, %v60
    %v1179 = vpop.permute.xlu0 %1178
    %v1181 = vadd.f32 %v1172, %v1179
    %v1182 = vadd.f32 %v1173, %v1179
    %v1183 = vadd.f32 %v1174, %v1179
    %v1184 = vadd.f32 %v1175, %v1179
    %vm1185 = vcmp.eq.s32.totalorder %v28, 0
    %vm1186 = vcmp.eq.s32.totalorder %v29, 0
    %vm1187 = vcmp.eq.s32.totalorder %v30, 0
    %vm1188 = vcmp.eq.s32.totalorder %v31, 0
    %v1189 = vsel %vm1185, 1, 0
    %v1190 = vsel %vm1186, 1, 0
    %v1191 = vsel %vm1187, 1, 0
    %v1192 = vsel %vm1188, 1, 0
    %v1193 = vcvt.s32.f32 %v1189
    %v1194 = vcvt.s32.f32 %v1190
    %v1195 = vcvt.s32.f32 %v1191
    %v1196 = vcvt.s32.f32 %v1192
    %v1197 = vmul.f32 %v1181, %v1193
    %v1198 = vmul.f32 %v1182, %v1194
    %v1199 = vmul.f32 %v1183, %v1195
    %v1200 = vmul.f32 %v1184, %v1196
    %v1201 = vsel %vm192, %v1197, 0.0
    %v1202 = vsel %vm192, %v1198, 0.0
    %v1203 = vadd.f32 %v1201, %v1202
    %v1204 = vsel %vm192, %v1199, 0.0
    %v1205 = vadd.f32 %v1203, %v1204
    %v1206 = vsel %vm192, %v1200, 0.0
    %v1207 = vadd.f32 %v1205, %v1206
    %1208 = vadd.xlane.f32.xlu0 %v1207
    %v1209 = vpop.xlane.xlu0 %1208
    %v1210 = vmul.f32 %v1209, 0.00390625
    %v1211 = vmul.f32 %v1197, %v1197
    %v1212 = vmul.f32 %v1198, %v1198
    %v1213 = vmul.f32 %v1199, %v1199
    %v1214 = vmul.f32 %v1200, %v1200
    %v1215 = vsel %vm192, %v1211, 0.0
    %v1216 = vsel %vm192, %v1212, 0.0
    %v1217 = vadd.f32 %v1215, %v1216
    %v1218 = vsel %vm192, %v1213, 0.0
    %v1219 = vadd.f32 %v1217, %v1218
    %v1220 = vsel %vm192, %v1214, 0.0
    %v1221 = vadd.f32 %v1219, %v1220
    %1222 = vadd.xlane.f32.xlu0 %v1221
    %v1223 = vpop.xlane.xlu0 %1222
    %v1224 = vmul.f32 %v1223, 0.00390625
    %v1225 = vmul.f32 %v1210, %v1210
    %v1226 = vsub.f32 %v1224, %v1225
    %v1227 = vadd.f32 %v1226, 1e-05
    %v1228 = vrsqrt.pop %v1227
    %v1229 = vmul.f32 %v1228, %v1227
    %v1230 = vmul.f32 %v1229, %v1228
    %v1231 = vmul.f32 0.5, %v1230
    %v1232 = vsub.f32 1.5, %v1231
    %v1233 = vmul.f32 %v1228, %v1232
    %vm1234 = vweird.f32 %v1227
    %vm1235 = vweird.f32 %v1228
    %vm1236 = vmor %vm1234, %vm1235
    %v1237 = vsel %vm1236, %v1228, %v1233
    %v1238 = vmul.f32 %v1210, %v1193
    %v1239 = vmul.f32 %v1210, %v1194
    %v1240 = vmul.f32 %v1210, %v1195
    %v1241 = vmul.f32 %v1210, %v1196
    %v1242 = vmul.f32 %v1237, %v1193
    %v1243 = vmul.f32 %v1237, %v1194
    %v1244 = vmul.f32 %v1237, %v1195
    %v1245 = vmul.f32 %v1237, %v1196
    %vm1246 = vcmp.eq.s32.totalorder %v28, 1
    %vm1247 = vcmp.eq.s32.totalorder %v29, 1
    %vm1248 = vcmp.eq.s32.totalorder %v30, 1
    %vm1249 = vcmp.eq.s32.totalorder %v31, 1
    %v1250 = vsel %vm1246, 1, 0
    %v1251 = vsel %vm1247, 1, 0
    %v1252 = vsel %vm1248, 1, 0
    %v1253 = vsel %vm1249, 1, 0
    %v1254 = vcvt.s32.f32 %v1250
    %v1255 = vcvt.s32.f32 %v1251
    %v1256 = vcvt.s32.f32 %v1252
    %v1257 = vcvt.s32.f32 %v1253
    %v1258 = vmul.f32 %v1181, %v1254
    %v1259 = vmul.f32 %v1182, %v1255
    %v1260 = vmul.f32 %v1183, %v1256
    %v1261 = vmul.f32 %v1184, %v1257
    %v1262 = vsel %vm192, %v1258, 0.0
    %v1263 = vsel %vm192, %v1259, 0.0
    %v1264 = vadd.f32 %v1262, %v1263
    %v1265 = vsel %vm192, %v1260, 0.0
    %v1266 = vadd.f32 %v1264, %v1265
    %v1267 = vsel %vm192, %v1261, 0.0
    %v1268 = vadd.f32 %v1266, %v1267
    %1269 = vadd.xlane.f32.xlu0 %v1268
    %v1270 = vpop.xlane.xlu0 %1269
    %v1271 = vmul.f32 %v1270, 0.00390625
    %v1272 = vmul.f32 %v1258, %v1258
    %v1273 = vmul.f32 %v1259, %v1259
    %v1274 = vmul.f32 %v1260, %v1260
    %v1275 = vmul.f32 %v1261, %v1261
    %v1276 = vsel %vm192, %v1272, 0.0
    %v1277 = vsel %vm192, %v1273, 0.0
    %v1278 = vadd.f32 %v1276, %v1277
    %v1279 = vsel %vm192, %v1274, 0.0
    %v1280 = vadd.f32 %v1278, %v1279
    %v1281 = vsel %vm192, %v1275, 0.0
    %v1282 = vadd.f32 %v1280, %v1281
    %1283 = vadd.xlane.f32.xlu0 %v1282
    %v1284 = vpop.xlane.xlu0 %1283
    %v1285 = vmul.f32 %v1284, 0.00390625
    %v1286 = vmul.f32 %v1271, %v1271
    %v1287 = vsub.f32 %v1285, %v1286
    %v1288 = vadd.f32 %v1287, 1e-05
    %v1289 = vrsqrt.pop %v1288
    %v1290 = vmul.f32 %v1289, %v1288
    %v1291 = vmul.f32 %v1290, %v1289
    %v1292 = vmul.f32 0.5, %v1291
    %v1293 = vsub.f32 1.5, %v1292
    %v1294 = vmul.f32 %v1289, %v1293
    %vm1295 = vweird.f32 %v1288
    %vm1296 = vweird.f32 %v1289
    %vm1297 = vmor %vm1295, %vm1296
    %v1298 = vsel %vm1297, %v1289, %v1294
    %v1299 = vmul.f32 %v1271, %v1254
    %v1300 = vmul.f32 %v1271, %v1255
    %v1301 = vmul.f32 %v1271, %v1256
    %v1302 = vmul.f32 %v1271, %v1257
    %v1303 = vmul.f32 %v1298, %v1254
    %v1304 = vmul.f32 %v1298, %v1255
    %v1305 = vmul.f32 %v1298, %v1256
    %v1306 = vmul.f32 %v1298, %v1257
    %v1307 = vadd.f32 %v1238, %v1299
    %v1308 = vadd.f32 %v1239, %v1300
    %v1309 = vadd.f32 %v1240, %v1301
    %v1310 = vadd.f32 %v1241, %v1302
    %v1311 = vadd.f32 %v1242, %v1303
    %v1312 = vadd.f32 %v1243, %v1304
    %v1313 = vadd.f32 %v1244, %v1305
    %v1314 = vadd.f32 %v1245, %v1306
    %v1315 = vsub.f32 %v1181, %v1307
    %v1316 = vsub.f32 %v1182, %v1308
    %v1317 = vsub.f32 %v1183, %v1309
    %v1318 = vsub.f32 %v1184, %v1310
    %v1319 = vmul.f32 %v1315, %v1311
    %v1320 = vmul.f32 %v1316, %v1312
    %v1321 = vmul.f32 %v1317, %v1313
    %v1322 = vmul.f32 %v1318, %v1314
    %v1323 = vmax.f32 %v1319, 0.0
    %v1324 = vmax.f32 %v1320, 0.0
    %v1325 = vmax.f32 %v1321, 0.0
    %v1326 = vmax.f32 %v1322, 0.0
    %v1327 = vld [vmem:[%s4] sm:$0xf]
    %1328 = vrot.lane.b32.xlu0 %v1323, 112
    %v1329 = vpop.permute.xlu0 %1328
    %1330 = vrot.lane.b32.xlu0 %v1324, 112
    %v1331 = vpop.permute.xlu0 %1330
    %1332 = vrot.lane.b32.xlu0 %v1325, 112
    %v1333 = vpop.permute.xlu0 %1332
    %1334 = vrot.lane.b32.xlu0 %v1326, 112
    %v1335 = vpop.permute.xlu0 %1334
    %v1336 = vsel %vm82, %v1333, %v1335
    %v1337 = vsel %vm82, %v1331, %v1333
    %v1338 = vsel %vm82, %v1329, %v1331
    %v1339 = vsel %vm82, %v1335, %v1329
    %1340 = vrot.lane.b32.xlu0 %v1323, 16
    %v1341 = vpop.permute.xlu0 %1340
    %1342 = vrot.lane.b32.xlu0 %v1324, 16
    %v1343 = vpop.permute.xlu0 %1342
    %1344 = vrot.lane.b32.xlu0 %v1325, 16
    %v1345 = vpop.permute.xlu0 %1344
    %1346 = vrot.lane.b32.xlu0 %v1326, 16
    %v1347 = vpop.permute.xlu0 %1346
    %v1348 = vsel %vm106, %v1345, %v1347
    %v1349 = vsel %vm106, %v1343, %v1345
    %v1350 = vsel %vm106, %v1341, %v1343
    %v1351 = vsel %vm106, %v1347, %v1341
    %v1352 = vsel %vm115, %v1338, %v1351
    %v1353 = vsel %vm116, %v1337, %v1350
    %v1354 = vsel %vm117, %v1336, %v1349
    %v1355 = vsel %vm118, %v1339, %v1348
    %v1356 = vsel %vm127, %v1351, %v1338
    %v1357 = vsel %vm128, %v1350, %v1337
    %v1358 = vsel %vm129, %v1349, %v1336
    %v1359 = vsel %vm130, %v1348, %v1339
    %1360 = vrot.lane.b32.xlu0 %v1352, 127
    %v1361 = vpop.permute.xlu0 %1360
    %1362 = vrot.lane.b32.xlu0 %v1353, 127
    %v1363 = vpop.permute.xlu0 %1362
    %1364 = vrot.lane.b32.xlu0 %v1354, 127
    %v1365 = vpop.permute.xlu0 %1364
    %1366 = vrot.lane.b32.xlu0 %v1355, 127
    %v1367 = vpop.permute.xlu0 %1366
    %v1368 = vsel %vm143, %v1365, %v1367
    %v1369 = vsel %vm143, %v1363, %v1365
    %v1370 = vsel %vm143, %v1361, %v1363
    %v1371 = vsel %vm143, %v1367, %v1361
    %1372 = vrot.lane.b32.xlu0 %v1352, 1
    %v1373 = vpop.permute.xlu0 %1372
    %1374 = vrot.lane.b32.xlu0 %v1353, 1
    %v1375 = vpop.permute.xlu0 %1374
    %1376 = vrot.lane.b32.xlu0 %v1354, 1
    %v1377 = vpop.permute.xlu0 %1376
    %1378 = vrot.lane.b32.xlu0 %v1355, 1
    %v1379 = vpop.permute.xlu0 %1378
    %v1380 = vsel %vm156, %v1377, %v1379
    %v1381 = vsel %vm156, %v1375, %v1377
    %v1382 = vsel %vm156, %v1373, %v1375
    %v1383 = vsel %vm156, %v1379, %v1373
    %v1384 = vsel %vm165, %v1370, %v1383
    %v1385 = vsel %vm166, %v1369, %v1382
    %v1386 = vsel %vm167, %v1368, %v1381
    %v1387 = vsel %vm168, %v1371, %v1380
    %v1388 = vsel %vm177, %v1383, %v1370
    %v1389 = vsel %vm178, %v1382, %v1369
    %v1390 = vsel %vm179, %v1381, %v1368
    %v1391 = vsel %vm180, %v1380, %v1371
    %v1392 = vld [vmem:[%s3] sm:$0xf]
    %s1393 = scalar_lea.vmem %s3, 4
    %v1394 = vld [vmem:[%s1393] sm:$0xf]
    %v1396 = vsel %vm188, %v1394, 0
    %v1399 = vsel %vm192, %v1352, 0
    %v1402 = vsel %vm192, %v1353, 0
    %v1405 = vsel %vm192, %v1354, 0
    %v1408 = vsel %vm192, %v1355, 0
    %1410 = vmatpush.msra.mxu0 0.0
    %1411 = vmatpush.msra.mxu0 0.0
    %1412 = vmatpush.msra.mxu0 0.0
    %1413 = vmatpush.msra.mxu0 0.0
    %1414 = vmatpush.msra.mxu0 0.0
    %1415 = vmatpush.msra.mxu0 0.0
    %1416 = vmatpush.msra.mxu0 0.0
    %1417 = vmatpush.msra.mxu0 0.0
    %1418 = vmatpush.msra.mxu0 0.0
    %1419 = vmatpush.msra.mxu0 0.0
    %1420 = vmatpush.msra.mxu0 0.0
    %1421 = vmatpush.msra.mxu0 0.0
    %1422 = vmatpush.msra.mxu0 0.0
    %1423 = vmatpush.msra.mxu0 0.0
    %1424 = vmatpush.msra.mxu0 0.0
    %1425 = vmatpush.msra.mxu0 %v1399
    %1426 = vmatmul.f32.gmra.mxu0 %v1396
    %v1427 = vpop.f32.mrf.mxu0
    %v1428 = vadd.f32 0.0, %v1427
    %1429 = vdwg.mxu0
    %1430 = vmatpush.msra.mxu0 0.0
    %1431 = vmatpush.msra.mxu0 0.0
    %1432 = vmatpush.msra.mxu0 0.0
    %1433 = vmatpush.msra.mxu0 0.0
    %1434 = vmatpush.msra.mxu0 0.0
    %1435 = vmatpush.msra.mxu0 0.0
    %1436 = vmatpush.msra.mxu0 0.0
    %1437 = vmatpush.msra.mxu0 0.0
    %1438 = vmatpush.msra.mxu0 0.0
    %1439 = vmatpush.msra.mxu0 0.0
    %1440 = vmatpush.msra.mxu0 0.0
    %1441 = vmatpush.msra.mxu0 0.0
    %1442 = vmatpush.msra.mxu0 0.0
    %1443 = vmatpush.msra.mxu0 0.0
    %1444 = vmatpush.msra.mxu0 0.0
    %1445 = vmatpush.msra.mxu0 %v1402
    %1446 = vmatmul.f32.gmra.mxu0 %v1396
    %v1447 = vpop.f32.mrf.mxu0
    %v1448 = vadd.f32 0.0, %v1447
    %1449 = vdwg.mxu0
    %1450 = vmatpush.msra.mxu0 0.0
    %1451 = vmatpush.msra.mxu0 0.0
    %1452 = vmatpush.msra.mxu0 0.0
    %1453 = vmatpush.msra.mxu0 0.0
    %1454 = vmatpush.msra.mxu0 0.0
    %1455 = vmatpush.msra.mxu0 0.0
    %1456 = vmatpush.msra.mxu0 0.0
    %1457 = vmatpush.msra.mxu0 0.0
    %1458 = vmatpush.msra.mxu0 0.0
    %1459 = vmatpush.msra.mxu0 0.0
    %1460 = vmatpush.msra.mxu0 0.0
    %1461 = vmatpush.msra.mxu0 0.0
    %1462 = vmatpush.msra.mxu0 0.0
    %1463 = vmatpush.msra.mxu0 0.0
    %1464 = vmatpush.msra.mxu0 0.0
    %1465 = vmatpush.msra.mxu0 %v1405
    %1466 = vmatmul.f32.gmra.mxu0 %v1396
    %v1467 = vpop.f32.mrf.mxu0
    %v1468 = vadd.f32 0.0, %v1467
    %1469 = vdwg.mxu0
    %1470 = vmatpush.msra.mxu0 0.0
    %1471 = vmatpush.msra.mxu0 0.0
    %1472 = vmatpush.msra.mxu0 0.0
    %1473 = vmatpush.msra.mxu0 0.0
    %1474 = vmatpush.msra.mxu0 0.0
    %1475 = vmatpush.msra.mxu0 0.0
    %1476 = vmatpush.msra.mxu0 0.0
    %1477 = vmatpush.msra.mxu0 0.0
    %1478 = vmatpush.msra.mxu0 0.0
    %1479 = vmatpush.msra.mxu0 0.0
    %1480 = vmatpush.msra.mxu0 0.0
    %1481 = vmatpush.msra.mxu0 0.0
    %1482 = vmatpush.msra.mxu0 0.0
    %1483 = vmatpush.msra.mxu0 0.0
    %1484 = vmatpush.msra.mxu0 0.0
    %1485 = vmatpush.msra.mxu0 %v1408
    %1486 = vmatmul.f32.gmra.mxu0 %v1396
    %v1487 = vpop.f32.mrf.mxu0
    %v1488 = vadd.f32 0.0, %v1487
    %1489 = vdwg.mxu0
    %v1491 = vsel %vm188, %v1392, 0
    %v1494 = vsel %vm192, %v1384, 0
    %v1497 = vsel %vm192, %v1385, 0
    %v1500 = vsel %vm192, %v1386, 0
    %v1503 = vsel %vm192, %v1387, 0
    %1505 = vmatpush.msra.mxu0 0.0
    %1506 = vmatpush.msra.mxu0 0.0
    %1507 = vmatpush.msra.mxu0 0.0
    %1508 = vmatpush.msra.mxu0 0.0
    %1509 = vmatpush.msra.mxu0 0.0
    %1510 = vmatpush.msra.mxu0 0.0
    %1511 = vmatpush.msra.mxu0 0.0
    %1512 = vmatpush.msra.mxu0 0.0
    %1513 = vmatpush.msra.mxu0 0.0
    %1514 = vmatpush.msra.mxu0 0.0
    %1515 = vmatpush.msra.mxu0 0.0
    %1516 = vmatpush.msra.mxu0 0.0
    %1517 = vmatpush.msra.mxu0 0.0
    %1518 = vmatpush.msra.mxu0 0.0
    %1519 = vmatpush.msra.mxu0 0.0
    %1520 = vmatpush.msra.mxu0 %v1494
    %1521 = vmatmul.f32.gmra.mxu0 %v1491
    %v1522 = vpop.f32.mrf.mxu0
    %v1523 = vadd.f32 %v1428, %v1522
    %1524 = vdwg.mxu0
    %1525 = vmatpush.msra.mxu0 0.0
    %1526 = vmatpush.msra.mxu0 0.0
    %1527 = vmatpush.msra.mxu0 0.0
    %1528 = vmatpush.msra.mxu0 0.0
    %1529 = vmatpush.msra.mxu0 0.0
    %1530 = vmatpush.msra.mxu0 0.0
    %1531 = vmatpush.msra.mxu0 0.0
    %1532 = vmatpush.msra.mxu0 0.0
    %1533 = vmatpush.msra.mxu0 0.0
    %1534 = vmatpush.msra.mxu0 0.0
    %1535 = vmatpush.msra.mxu0 0.0
    %1536 = vmatpush.msra.mxu0 0.0
    %1537 = vmatpush.msra.mxu0 0.0
    %1538 = vmatpush.msra.mxu0 0.0
    %1539 = vmatpush.msra.mxu0 0.0
    %1540 = vmatpush.msra.mxu0 %v1497
    %1541 = vmatmul.f32.gmra.mxu0 %v1491
    %v1542 = vpop.f32.mrf.mxu0
    %v1543 = vadd.f32 %v1448, %v1542
    %1544 = vdwg.mxu0
    %1545 = vmatpush.msra.mxu0 0.0
    %1546 = vmatpush.msra.mxu0 0.0
    %1547 = vmatpush.msra.mxu0 0.0
    %1548 = vmatpush.msra.mxu0 0.0
    %1549 = vmatpush.msra.mxu0 0.0
    %1550 = vmatpush.msra.mxu0 0.0
    %1551 = vmatpush.msra.mxu0 0.0
    %1552 = vmatpush.msra.mxu0 0.0
    %1553 = vmatpush.msra.mxu0 0.0
    %1554 = vmatpush.msra.mxu0 0.0
    %1555 = vmatpush.msra.mxu0 0.0
    %1556 = vmatpush.msra.mxu0 0.0
    %1557 = vmatpush.msra.mxu0 0.0
    %1558 = vmatpush.msra.mxu0 0.0
    %1559 = vmatpush.msra.mxu0 0.0
    %1560 = vmatpush.msra.mxu0 %v1500
    %1561 = vmatmul.f32.gmra.mxu0 %v1491
    %v1562 = vpop.f32.mrf.mxu0
    %v1563 = vadd.f32 %v1468, %v1562
    %1564 = vdwg.mxu0
    %1565 = vmatpush.msra.mxu0 0.0
    %1566 = vmatpush.msra.mxu0 0.0
    %1567 = vmatpush.msra.mxu0 0.0
    %1568 = vmatpush.msra.mxu0 0.0
    %1569 = vmatpush.msra.mxu0 0.0
    %1570 = vmatpush.msra.mxu0 0.0
    %1571 = vmatpush.msra.mxu0 0.0
    %1572 = vmatpush.msra.mxu0 0.0
    %1573 = vmatpush.msra.mxu0 0.0
    %1574 = vmatpush.msra.mxu0 0.0
    %1575 = vmatpush.msra.mxu0 0.0
    %1576 = vmatpush.msra.mxu0 0.0
    %1577 = vmatpush.msra.mxu0 0.0
    %1578 = vmatpush.msra.mxu0 0.0
    %1579 = vmatpush.msra.mxu0 0.0
    %1580 = vmatpush.msra.mxu0 %v1503
    %1581 = vmatmul.f32.gmra.mxu0 %v1491
    %v1582 = vpop.f32.mrf.mxu0
    %v1583 = vadd.f32 %v1488, %v1582
    %1584 = vdwg.mxu0
    %s1585 = scalar_lea.vmem %s3, 8
    %v1586 = vld [vmem:[%s1585] sm:$0xf]
    %v1588 = vsel %vm188, %v1586, 0
    %v1591 = vsel %vm192, %v1388, 0
    %v1594 = vsel %vm192, %v1389, 0
    %v1597 = vsel %vm192, %v1390, 0
    %v1600 = vsel %vm192, %v1391, 0
    %1602 = vmatpush.msra.mxu0 0.0
    %1603 = vmatpush.msra.mxu0 0.0
    %1604 = vmatpush.msra.mxu0 0.0
    %1605 = vmatpush.msra.mxu0 0.0
    %1606 = vmatpush.msra.mxu0 0.0
    %1607 = vmatpush.msra.mxu0 0.0
    %1608 = vmatpush.msra.mxu0 0.0
    %1609 = vmatpush.msra.mxu0 0.0
    %1610 = vmatpush.msra.mxu0 0.0
    %1611 = vmatpush.msra.mxu0 0.0
    %1612 = vmatpush.msra.mxu0 0.0
    %1613 = vmatpush.msra.mxu0 0.0
    %1614 = vmatpush.msra.mxu0 0.0
    %1615 = vmatpush.msra.mxu0 0.0
    %1616 = vmatpush.msra.mxu0 0.0
    %1617 = vmatpush.msra.mxu0 %v1591
    %1618 = vmatmul.f32.gmra.mxu0 %v1588
    %v1619 = vpop.f32.mrf.mxu0
    %v1620 = vadd.f32 0.0, %v1619
    %1621 = vdwg.mxu0
    %1622 = vmatpush.msra.mxu0 0.0
    %1623 = vmatpush.msra.mxu0 0.0
    %1624 = vmatpush.msra.mxu0 0.0
    %1625 = vmatpush.msra.mxu0 0.0
    %1626 = vmatpush.msra.mxu0 0.0
    %1627 = vmatpush.msra.mxu0 0.0
    %1628 = vmatpush.msra.mxu0 0.0
    %1629 = vmatpush.msra.mxu0 0.0
    %1630 = vmatpush.msra.mxu0 0.0
    %1631 = vmatpush.msra.mxu0 0.0
    %1632 = vmatpush.msra.mxu0 0.0
    %1633 = vmatpush.msra.mxu0 0.0
    %1634 = vmatpush.msra.mxu0 0.0
    %1635 = vmatpush.msra.mxu0 0.0
    %1636 = vmatpush.msra.mxu0 0.0
    %1637 = vmatpush.msra.mxu0 %v1594
    %1638 = vmatmul.f32.gmra.mxu0 %v1588
    %v1639 = vpop.f32.mrf.mxu0
    %v1640 = vadd.f32 0.0, %v1639
    %1641 = vdwg.mxu0
    %1642 = vmatpush.msra.mxu0 0.0
    %1643 = vmatpush.msra.mxu0 0.0
    %1644 = vmatpush.msra.mxu0 0.0
    %1645 = vmatpush.msra.mxu0 0.0
    %1646 = vmatpush.msra.mxu0 0.0
    %1647 = vmatpush.msra.mxu0 0.0
    %1648 = vmatpush.msra.mxu0 0.0
    %1649 = vmatpush.msra.mxu0 0.0
    %1650 = vmatpush.msra.mxu0 0.0
    %1651 = vmatpush.msra.mxu0 0.0
    %1652 = vmatpush.msra.mxu0 0.0
    %1653 = vmatpush.msra.mxu0 0.0
    %1654 = vmatpush.msra.mxu0 0.0
    %1655 = vmatpush.msra.mxu0 0.0
    %1656 = vmatpush.msra.mxu0 0.0
    %1657 = vmatpush.msra.mxu0 %v1597
    %1658 = vmatmul.f32.gmra.mxu0 %v1588
    %v1659 = vpop.f32.mrf.mxu0
    %v1660 = vadd.f32 0.0, %v1659
    %1661 = vdwg.mxu0
    %1662 = vmatpush.msra.mxu0 0.0
    %1663 = vmatpush.msra.mxu0 0.0
    %1664 = vmatpush.msra.mxu0 0.0
    %1665 = vmatpush.msra.mxu0 0.0
    %1666 = vmatpush.msra.mxu0 0.0
    %1667 = vmatpush.msra.mxu0 0.0
    %1668 = vmatpush.msra.mxu0 0.0
    %1669 = vmatpush.msra.mxu0 0.0
    %1670 = vmatpush.msra.mxu0 0.0
    %1671 = vmatpush.msra.mxu0 0.0
    %1672 = vmatpush.msra.mxu0 0.0
    %1673 = vmatpush.msra.mxu0 0.0
    %1674 = vmatpush.msra.mxu0 0.0
    %1675 = vmatpush.msra.mxu0 0.0
    %1676 = vmatpush.msra.mxu0 0.0
    %1677 = vmatpush.msra.mxu0 %v1600
    %1678 = vmatmul.f32.gmra.mxu0 %v1588
    %v1679 = vpop.f32.mrf.mxu0
    %v1680 = vadd.f32 0.0, %v1679
    %1681 = vdwg.mxu0
    %v1682 = vadd.f32 %v1523, %v1620
    %v1683 = vadd.f32 %v1543, %v1640
    %v1684 = vadd.f32 %v1563, %v1660
    %v1685 = vadd.f32 %v1583, %v1680
    %1686 = vrot.lane.b32.xlu0 %v1323, 127
    %v1687 = vpop.permute.xlu0 %1686
    %1688 = vrot.lane.b32.xlu0 %v1324, 127
    %v1689 = vpop.permute.xlu0 %1688
    %1690 = vrot.lane.b32.xlu0 %v1325, 127
    %v1691 = vpop.permute.xlu0 %1690
    %1692 = vrot.lane.b32.xlu0 %v1326, 127
    %v1693 = vpop.permute.xlu0 %1692
    %v1694 = vsel %vm143, %v1691, %v1693
    %v1695 = vsel %vm143, %v1689, %v1691
    %v1696 = vsel %vm143, %v1687, %v1689
    %v1697 = vsel %vm143, %v1693, %v1687
    %1698 = vrot.lane.b32.xlu0 %v1323, 1
    %v1699 = vpop.permute.xlu0 %1698
    %1700 = vrot.lane.b32.xlu0 %v1324, 1
    %v1701 = vpop.permute.xlu0 %1700
    %1702 = vrot.lane.b32.xlu0 %v1325, 1
    %v1703 = vpop.permute.xlu0 %1702
    %1704 = vrot.lane.b32.xlu0 %v1326, 1
    %v1705 = vpop.permute.xlu0 %1704
    %v1706 = vsel %vm156, %v1703, %v1705
    %v1707 = vsel %vm156, %v1701, %v1703
    %v1708 = vsel %vm156, %v1699, %v1701
    %v1709 = vsel %vm156, %v1705, %v1699
    %v1710 = vsel %vm165, %v1696, %v1709
    %v1711 = vsel %vm166, %v1695, %v1708
    %v1712 = vsel %vm167, %v1694, %v1707
    %v1713 = vsel %vm168, %v1697, %v1706
    %v1714 = vsel %vm177, %v1709, %v1696
    %v1715 = vsel %vm178, %v1708, %v1695
    %v1716 = vsel %vm179, %v1707, %v1694
    %v1717 = vsel %vm180, %v1706, %v1697
    %s1718 = scalar_lea.vmem %s3, 12
    %v1719 = vld [vmem:[%s1718] sm:$0xf]
    %v1721 = vsel %vm188, %v1719, 0
    %v1724 = vsel %vm192, %v1710, 0
    %v1727 = vsel %vm192, %v1711, 0
    %v1730 = vsel %vm192, %v1712, 0
    %v1733 = vsel %vm192, %v1713, 0
    %1735 = vmatpush.msra.mxu0 0.0
    %1736 = vmatpush.msra.mxu0 0.0
    %1737 = vmatpush.msra.mxu0 0.0
    %1738 = vmatpush.msra.mxu0 0.0
    %1739 = vmatpush.msra.mxu0 0.0
    %1740 = vmatpush.msra.mxu0 0.0
    %1741 = vmatpush.msra.mxu0 0.0
    %1742 = vmatpush.msra.mxu0 0.0
    %1743 = vmatpush.msra.mxu0 0.0
    %1744 = vmatpush.msra.mxu0 0.0
    %1745 = vmatpush.msra.mxu0 0.0
    %1746 = vmatpush.msra.mxu0 0.0
    %1747 = vmatpush.msra.mxu0 0.0
    %1748 = vmatpush.msra.mxu0 0.0
    %1749 = vmatpush.msra.mxu0 0.0
    %1750 = vmatpush.msra.mxu0 %v1724
    %1751 = vmatmul.f32.gmra.mxu0 %v1721
    %v1752 = vpop.f32.mrf.mxu0
    %v1753 = vadd.f32 0.0, %v1752
    %1754 = vdwg.mxu0
    %1755 = vmatpush.msra.mxu0 0.0
    %1756 = vmatpush.msra.mxu0 0.0
    %1757 = vmatpush.msra.mxu0 0.0
    %1758 = vmatpush.msra.mxu0 0.0
    %1759 = vmatpush.msra.mxu0 0.0
    %1760 = vmatpush.msra.mxu0 0.0
    %1761 = vmatpush.msra.mxu0 0.0
    %1762 = vmatpush.msra.mxu0 0.0
    %1763 = vmatpush.msra.mxu0 0.0
    %1764 = vmatpush.msra.mxu0 0.0
    %1765 = vmatpush.msra.mxu0 0.0
    %1766 = vmatpush.msra.mxu0 0.0
    %1767 = vmatpush.msra.mxu0 0.0
    %1768 = vmatpush.msra.mxu0 0.0
    %1769 = vmatpush.msra.mxu0 0.0
    %1770 = vmatpush.msra.mxu0 %v1727
    %1771 = vmatmul.f32.gmra.mxu0 %v1721
    %v1772 = vpop.f32.mrf.mxu0
    %v1773 = vadd.f32 0.0, %v1772
    %1774 = vdwg.mxu0
    %1775 = vmatpush.msra.mxu0 0.0
    %1776 = vmatpush.msra.mxu0 0.0
    %1777 = vmatpush.msra.mxu0 0.0
    %1778 = vmatpush.msra.mxu0 0.0
    %1779 = vmatpush.msra.mxu0 0.0
    %1780 = vmatpush.msra.mxu0 0.0
    %1781 = vmatpush.msra.mxu0 0.0
    %1782 = vmatpush.msra.mxu0 0.0
    %1783 = vmatpush.msra.mxu0 0.0
    %1784 = vmatpush.msra.mxu0 0.0
    %1785 = vmatpush.msra.mxu0 0.0
    %1786 = vmatpush.msra.mxu0 0.0
    %1787 = vmatpush.msra.mxu0 0.0
    %1788 = vmatpush.msra.mxu0 0.0
    %1789 = vmatpush.msra.mxu0 0.0
    %1790 = vmatpush.msra.mxu0 %v1730
    %1791 = vmatmul.f32.gmra.mxu0 %v1721
    %v1792 = vpop.f32.mrf.mxu0
    %v1793 = vadd.f32 0.0, %v1792
    %1794 = vdwg.mxu0
    %1795 = vmatpush.msra.mxu0 0.0
    %1796 = vmatpush.msra.mxu0 0.0
    %1797 = vmatpush.msra.mxu0 0.0
    %1798 = vmatpush.msra.mxu0 0.0
    %1799 = vmatpush.msra.mxu0 0.0
    %1800 = vmatpush.msra.mxu0 0.0
    %1801 = vmatpush.msra.mxu0 0.0
    %1802 = vmatpush.msra.mxu0 0.0
    %1803 = vmatpush.msra.mxu0 0.0
    %1804 = vmatpush.msra.mxu0 0.0
    %1805 = vmatpush.msra.mxu0 0.0
    %1806 = vmatpush.msra.mxu0 0.0
    %1807 = vmatpush.msra.mxu0 0.0
    %1808 = vmatpush.msra.mxu0 0.0
    %1809 = vmatpush.msra.mxu0 0.0
    %1810 = vmatpush.msra.mxu0 %v1733
    %1811 = vmatmul.f32.gmra.mxu0 %v1721
    %v1812 = vpop.f32.mrf.mxu0
    %v1813 = vadd.f32 0.0, %v1812
    %1814 = vdwg.mxu0
    %v1815 = vadd.f32 %v1682, %v1753
    %v1816 = vadd.f32 %v1683, %v1773
    %v1817 = vadd.f32 %v1684, %v1793
    %v1818 = vadd.f32 %v1685, %v1813
    %s1819 = scalar_lea.vmem %s3, 16
    %v1820 = vld [vmem:[%s1819] sm:$0xf]
    %v1822 = vsel %vm188, %v1820, 0
    %v1825 = vsel %vm192, %v1323, 0
    %v1828 = vsel %vm192, %v1324, 0
    %v1831 = vsel %vm192, %v1325, 0
    %v1834 = vsel %vm192, %v1326, 0
    %1836 = vmatpush.msra.mxu0 0.0
    %1837 = vmatpush.msra.mxu0 0.0
    %1838 = vmatpush.msra.mxu0 0.0
    %1839 = vmatpush.msra.mxu0 0.0
    %1840 = vmatpush.msra.mxu0 0.0
    %1841 = vmatpush.msra.mxu0 0.0
    %1842 = vmatpush.msra.mxu0 0.0
    %1843 = vmatpush.msra.mxu0 0.0
    %1844 = vmatpush.msra.mxu0 0.0
    %1845 = vmatpush.msra.mxu0 0.0
    %1846 = vmatpush.msra.mxu0 0.0
    %1847 = vmatpush.msra.mxu0 0.0
    %1848 = vmatpush.msra.mxu0 0.0
    %1849 = vmatpush.msra.mxu0 0.0
    %1850 = vmatpush.msra.mxu0 0.0
    %1851 = vmatpush.msra.mxu0 %v1825
    %1852 = vmatmul.f32.gmra.mxu0 %v1822
    %v1853 = vpop.f32.mrf.mxu0
    %v1854 = vadd.f32 0.0, %v1853
    %1855 = vdwg.mxu0
    %1856 = vmatpush.msra.mxu0 0.0
    %1857 = vmatpush.msra.mxu0 0.0
    %1858 = vmatpush.msra.mxu0 0.0
    %1859 = vmatpush.msra.mxu0 0.0
    %1860 = vmatpush.msra.mxu0 0.0
    %1861 = vmatpush.msra.mxu0 0.0
    %1862 = vmatpush.msra.mxu0 0.0
    %1863 = vmatpush.msra.mxu0 0.0
    %1864 = vmatpush.msra.mxu0 0.0
    %1865 = vmatpush.msra.mxu0 0.0
    %1866 = vmatpush.msra.mxu0 0.0
    %1867 = vmatpush.msra.mxu0 0.0
    %1868 = vmatpush.msra.mxu0 0.0
    %1869 = vmatpush.msra.mxu0 0.0
    %1870 = vmatpush.msra.mxu0 0.0
    %1871 = vmatpush.msra.mxu0 %v1828
    %1872 = vmatmul.f32.gmra.mxu0 %v1822
    %v1873 = vpop.f32.mrf.mxu0
    %v1874 = vadd.f32 0.0, %v1873
    %1875 = vdwg.mxu0
    %1876 = vmatpush.msra.mxu0 0.0
    %1877 = vmatpush.msra.mxu0 0.0
    %1878 = vmatpush.msra.mxu0 0.0
    %1879 = vmatpush.msra.mxu0 0.0
    %1880 = vmatpush.msra.mxu0 0.0
    %1881 = vmatpush.msra.mxu0 0.0
    %1882 = vmatpush.msra.mxu0 0.0
    %1883 = vmatpush.msra.mxu0 0.0
    %1884 = vmatpush.msra.mxu0 0.0
    %1885 = vmatpush.msra.mxu0 0.0
    %1886 = vmatpush.msra.mxu0 0.0
    %1887 = vmatpush.msra.mxu0 0.0
    %1888 = vmatpush.msra.mxu0 0.0
    %1889 = vmatpush.msra.mxu0 0.0
    %1890 = vmatpush.msra.mxu0 0.0
    %1891 = vmatpush.msra.mxu0 %v1831
    %1892 = vmatmul.f32.gmra.mxu0 %v1822
    %v1893 = vpop.f32.mrf.mxu0
    %v1894 = vadd.f32 0.0, %v1893
    %1895 = vdwg.mxu0
    %1896 = vmatpush.msra.mxu0 0.0
    %1897 = vmatpush.msra.mxu0 0.0
    %1898 = vmatpush.msra.mxu0 0.0
    %1899 = vmatpush.msra.mxu0 0.0
    %1900 = vmatpush.msra.mxu0 0.0
    %1901 = vmatpush.msra.mxu0 0.0
    %1902 = vmatpush.msra.mxu0 0.0
    %1903 = vmatpush.msra.mxu0 0.0
    %1904 = vmatpush.msra.mxu0 0.0
    %1905 = vmatpush.msra.mxu0 0.0
    %1906 = vmatpush.msra.mxu0 0.0
    %1907 = vmatpush.msra.mxu0 0.0
    %1908 = vmatpush.msra.mxu0 0.0
    %1909 = vmatpush.msra.mxu0 0.0
    %1910 = vmatpush.msra.mxu0 0.0
    %1911 = vmatpush.msra.mxu0 %v1834
    %1912 = vmatmul.f32.gmra.mxu0 %v1822
    %v1913 = vpop.f32.mrf.mxu0
    %v1914 = vadd.f32 0.0, %v1913
    %1915 = vdwg.mxu0
    %v1916 = vadd.f32 %v1815, %v1854
    %v1917 = vadd.f32 %v1816, %v1874
    %v1918 = vadd.f32 %v1817, %v1894
    %v1919 = vadd.f32 %v1818, %v1914
    %s1920 = scalar_lea.vmem %s3, 20
    %v1921 = vld [vmem:[%s1920] sm:$0xf]
    %v1923 = vsel %vm188, %v1921, 0
    %v1926 = vsel %vm192, %v1714, 0
    %v1929 = vsel %vm192, %v1715, 0
    %v1932 = vsel %vm192, %v1716, 0
    %v1935 = vsel %vm192, %v1717, 0
    %1937 = vmatpush.msra.mxu0 0.0
    %1938 = vmatpush.msra.mxu0 0.0
    %1939 = vmatpush.msra.mxu0 0.0
    %1940 = vmatpush.msra.mxu0 0.0
    %1941 = vmatpush.msra.mxu0 0.0
    %1942 = vmatpush.msra.mxu0 0.0
    %1943 = vmatpush.msra.mxu0 0.0
    %1944 = vmatpush.msra.mxu0 0.0
    %1945 = vmatpush.msra.mxu0 0.0
    %1946 = vmatpush.msra.mxu0 0.0
    %1947 = vmatpush.msra.mxu0 0.0
    %1948 = vmatpush.msra.mxu0 0.0
    %1949 = vmatpush.msra.mxu0 0.0
    %1950 = vmatpush.msra.mxu0 0.0
    %1951 = vmatpush.msra.mxu0 0.0
    %1952 = vmatpush.msra.mxu0 %v1926
    %1953 = vmatmul.f32.gmra.mxu0 %v1923
    %v1954 = vpop.f32.mrf.mxu0
    %v1955 = vadd.f32 0.0, %v1954
    %1956 = vdwg.mxu0
    %1957 = vmatpush.msra.mxu0 0.0
    %1958 = vmatpush.msra.mxu0 0.0
    %1959 = vmatpush.msra.mxu0 0.0
    %1960 = vmatpush.msra.mxu0 0.0
    %1961 = vmatpush.msra.mxu0 0.0
    %1962 = vmatpush.msra.mxu0 0.0
    %1963 = vmatpush.msra.mxu0 0.0
    %1964 = vmatpush.msra.mxu0 0.0
    %1965 = vmatpush.msra.mxu0 0.0
    %1966 = vmatpush.msra.mxu0 0.0
    %1967 = vmatpush.msra.mxu0 0.0
    %1968 = vmatpush.msra.mxu0 0.0
    %1969 = vmatpush.msra.mxu0 0.0
    %1970 = vmatpush.msra.mxu0 0.0
    %1971 = vmatpush.msra.mxu0 0.0
    %1972 = vmatpush.msra.mxu0 %v1929
    %1973 = vmatmul.f32.gmra.mxu0 %v1923
    %v1974 = vpop.f32.mrf.mxu0
    %v1975 = vadd.f32 0.0, %v1974
    %1976 = vdwg.mxu0
    %1977 = vmatpush.msra.mxu0 0.0
    %1978 = vmatpush.msra.mxu0 0.0
    %1979 = vmatpush.msra.mxu0 0.0
    %1980 = vmatpush.msra.mxu0 0.0
    %1981 = vmatpush.msra.mxu0 0.0
    %1982 = vmatpush.msra.mxu0 0.0
    %1983 = vmatpush.msra.mxu0 0.0
    %1984 = vmatpush.msra.mxu0 0.0
    %1985 = vmatpush.msra.mxu0 0.0
    %1986 = vmatpush.msra.mxu0 0.0
    %1987 = vmatpush.msra.mxu0 0.0
    %1988 = vmatpush.msra.mxu0 0.0
    %1989 = vmatpush.msra.mxu0 0.0
    %1990 = vmatpush.msra.mxu0 0.0
    %1991 = vmatpush.msra.mxu0 0.0
    %1992 = vmatpush.msra.mxu0 %v1932
    %1993 = vmatmul.f32.gmra.mxu0 %v1923
    %v1994 = vpop.f32.mrf.mxu0
    %v1995 = vadd.f32 0.0, %v1994
    %1996 = vdwg.mxu0
    %1997 = vmatpush.msra.mxu0 0.0
    %1998 = vmatpush.msra.mxu0 0.0
    %1999 = vmatpush.msra.mxu0 0.0
    %2000 = vmatpush.msra.mxu0 0.0
    %2001 = vmatpush.msra.mxu0 0.0
    %2002 = vmatpush.msra.mxu0 0.0
    %2003 = vmatpush.msra.mxu0 0.0
    %2004 = vmatpush.msra.mxu0 0.0
    %2005 = vmatpush.msra.mxu0 0.0
    %2006 = vmatpush.msra.mxu0 0.0
    %2007 = vmatpush.msra.mxu0 0.0
    %2008 = vmatpush.msra.mxu0 0.0
    %2009 = vmatpush.msra.mxu0 0.0
    %2010 = vmatpush.msra.mxu0 0.0
    %2011 = vmatpush.msra.mxu0 0.0
    %2012 = vmatpush.msra.mxu0 %v1935
    %2013 = vmatmul.f32.gmra.mxu0 %v1923
    %v2014 = vpop.f32.mrf.mxu0
    %v2015 = vadd.f32 0.0, %v2014
    %2016 = vdwg.mxu0
    %v2017 = vadd.f32 %v1916, %v1955
    %v2018 = vadd.f32 %v1917, %v1975
    %v2019 = vadd.f32 %v1918, %v1995
    %v2020 = vadd.f32 %v1919, %v2015
    %2021 = vrot.lane.b32.xlu0 %v1356, 127
    %v2022 = vpop.permute.xlu0 %2021
    %2023 = vrot.lane.b32.xlu0 %v1357, 127
    %v2024 = vpop.permute.xlu0 %2023
    %2025 = vrot.lane.b32.xlu0 %v1358, 127
    %v2026 = vpop.permute.xlu0 %2025
    %2027 = vrot.lane.b32.xlu0 %v1359, 127
    %v2028 = vpop.permute.xlu0 %2027
    %v2029 = vsel %vm143, %v2026, %v2028
    %v2030 = vsel %vm143, %v2024, %v2026
    %v2031 = vsel %vm143, %v2022, %v2024
    %v2032 = vsel %vm143, %v2028, %v2022
    %2033 = vrot.lane.b32.xlu0 %v1356, 1
    %v2034 = vpop.permute.xlu0 %2033
    %2035 = vrot.lane.b32.xlu0 %v1357, 1
    %v2036 = vpop.permute.xlu0 %2035
    %2037 = vrot.lane.b32.xlu0 %v1358, 1
    %v2038 = vpop.permute.xlu0 %2037
    %2039 = vrot.lane.b32.xlu0 %v1359, 1
    %v2040 = vpop.permute.xlu0 %2039
    %v2041 = vsel %vm156, %v2038, %v2040
    %v2042 = vsel %vm156, %v2036, %v2038
    %v2043 = vsel %vm156, %v2034, %v2036
    %v2044 = vsel %vm156, %v2040, %v2034
    %v2045 = vsel %vm165, %v2031, %v2044
    %v2046 = vsel %vm166, %v2030, %v2043
    %v2047 = vsel %vm167, %v2029, %v2042
    %v2048 = vsel %vm168, %v2032, %v2041
    %v2049 = vsel %vm177, %v2044, %v2031
    %v2050 = vsel %vm178, %v2043, %v2030
    %v2051 = vsel %vm179, %v2042, %v2029
    %v2052 = vsel %vm180, %v2041, %v2032
    %s2053 = scalar_lea.vmem %s3, 24
    %v2054 = vld [vmem:[%s2053] sm:$0xf]
    %v2056 = vsel %vm188, %v2054, 0
    %v2059 = vsel %vm192, %v2045, 0
    %v2062 = vsel %vm192, %v2046, 0
    %v2065 = vsel %vm192, %v2047, 0
    %v2068 = vsel %vm192, %v2048, 0
    %2070 = vmatpush.msra.mxu0 0.0
    %2071 = vmatpush.msra.mxu0 0.0
    %2072 = vmatpush.msra.mxu0 0.0
    %2073 = vmatpush.msra.mxu0 0.0
    %2074 = vmatpush.msra.mxu0 0.0
    %2075 = vmatpush.msra.mxu0 0.0
    %2076 = vmatpush.msra.mxu0 0.0
    %2077 = vmatpush.msra.mxu0 0.0
    %2078 = vmatpush.msra.mxu0 0.0
    %2079 = vmatpush.msra.mxu0 0.0
    %2080 = vmatpush.msra.mxu0 0.0
    %2081 = vmatpush.msra.mxu0 0.0
    %2082 = vmatpush.msra.mxu0 0.0
    %2083 = vmatpush.msra.mxu0 0.0
    %2084 = vmatpush.msra.mxu0 0.0
    %2085 = vmatpush.msra.mxu0 %v2059
    %2086 = vmatmul.f32.gmra.mxu0 %v2056
    %v2087 = vpop.f32.mrf.mxu0
    %v2088 = vadd.f32 0.0, %v2087
    %2089 = vdwg.mxu0
    %2090 = vmatpush.msra.mxu0 0.0
    %2091 = vmatpush.msra.mxu0 0.0
    %2092 = vmatpush.msra.mxu0 0.0
    %2093 = vmatpush.msra.mxu0 0.0
    %2094 = vmatpush.msra.mxu0 0.0
    %2095 = vmatpush.msra.mxu0 0.0
    %2096 = vmatpush.msra.mxu0 0.0
    %2097 = vmatpush.msra.mxu0 0.0
    %2098 = vmatpush.msra.mxu0 0.0
    %2099 = vmatpush.msra.mxu0 0.0
    %2100 = vmatpush.msra.mxu0 0.0
    %2101 = vmatpush.msra.mxu0 0.0
    %2102 = vmatpush.msra.mxu0 0.0
    %2103 = vmatpush.msra.mxu0 0.0
    %2104 = vmatpush.msra.mxu0 0.0
    %2105 = vmatpush.msra.mxu0 %v2062
    %2106 = vmatmul.f32.gmra.mxu0 %v2056
    %v2107 = vpop.f32.mrf.mxu0
    %v2108 = vadd.f32 0.0, %v2107
    %2109 = vdwg.mxu0
    %2110 = vmatpush.msra.mxu0 0.0
    %2111 = vmatpush.msra.mxu0 0.0
    %2112 = vmatpush.msra.mxu0 0.0
    %2113 = vmatpush.msra.mxu0 0.0
    %2114 = vmatpush.msra.mxu0 0.0
    %2115 = vmatpush.msra.mxu0 0.0
    %2116 = vmatpush.msra.mxu0 0.0
    %2117 = vmatpush.msra.mxu0 0.0
    %2118 = vmatpush.msra.mxu0 0.0
    %2119 = vmatpush.msra.mxu0 0.0
    %2120 = vmatpush.msra.mxu0 0.0
    %2121 = vmatpush.msra.mxu0 0.0
    %2122 = vmatpush.msra.mxu0 0.0
    %2123 = vmatpush.msra.mxu0 0.0
    %2124 = vmatpush.msra.mxu0 0.0
    %2125 = vmatpush.msra.mxu0 %v2065
    %2126 = vmatmul.f32.gmra.mxu0 %v2056
    %v2127 = vpop.f32.mrf.mxu0
    %v2128 = vadd.f32 0.0, %v2127
    %2129 = vdwg.mxu0
    %2130 = vmatpush.msra.mxu0 0.0
    %2131 = vmatpush.msra.mxu0 0.0
    %2132 = vmatpush.msra.mxu0 0.0
    %2133 = vmatpush.msra.mxu0 0.0
    %2134 = vmatpush.msra.mxu0 0.0
    %2135 = vmatpush.msra.mxu0 0.0
    %2136 = vmatpush.msra.mxu0 0.0
    %2137 = vmatpush.msra.mxu0 0.0
    %2138 = vmatpush.msra.mxu0 0.0
    %2139 = vmatpush.msra.mxu0 0.0
    %2140 = vmatpush.msra.mxu0 0.0
    %2141 = vmatpush.msra.mxu0 0.0
    %2142 = vmatpush.msra.mxu0 0.0
    %2143 = vmatpush.msra.mxu0 0.0
    %2144 = vmatpush.msra.mxu0 0.0
    %2145 = vmatpush.msra.mxu0 %v2068
    %2146 = vmatmul.f32.gmra.mxu0 %v2056
    %v2147 = vpop.f32.mrf.mxu0
    %v2148 = vadd.f32 0.0, %v2147
    %2149 = vdwg.mxu0
    %v2150 = vadd.f32 %v2017, %v2088
    %v2151 = vadd.f32 %v2018, %v2108
    %v2152 = vadd.f32 %v2019, %v2128
    %v2153 = vadd.f32 %v2020, %v2148
    %s2154 = scalar_lea.vmem %s3, 28
    %v2155 = vld [vmem:[%s2154] sm:$0xf]
    %v2157 = vsel %vm188, %v2155, 0
    %v2160 = vsel %vm192, %v1356, 0
    %v2163 = vsel %vm192, %v1357, 0
    %v2166 = vsel %vm192, %v1358, 0
    %v2169 = vsel %vm192, %v1359, 0
    %2171 = vmatpush.msra.mxu0 0.0
    %2172 = vmatpush.msra.mxu0 0.0
    %2173 = vmatpush.msra.mxu0 0.0
    %2174 = vmatpush.msra.mxu0 0.0
    %2175 = vmatpush.msra.mxu0 0.0
    %2176 = vmatpush.msra.mxu0 0.0
    %2177 = vmatpush.msra.mxu0 0.0
    %2178 = vmatpush.msra.mxu0 0.0
    %2179 = vmatpush.msra.mxu0 0.0
    %2180 = vmatpush.msra.mxu0 0.0
    %2181 = vmatpush.msra.mxu0 0.0
    %2182 = vmatpush.msra.mxu0 0.0
    %2183 = vmatpush.msra.mxu0 0.0
    %2184 = vmatpush.msra.mxu0 0.0
    %2185 = vmatpush.msra.mxu0 0.0
    %2186 = vmatpush.msra.mxu0 %v2160
    %2187 = vmatmul.f32.gmra.mxu0 %v2157
    %v2188 = vpop.f32.mrf.mxu0
    %v2189 = vadd.f32 0.0, %v2188
    %2190 = vdwg.mxu0
    %2191 = vmatpush.msra.mxu0 0.0
    %2192 = vmatpush.msra.mxu0 0.0
    %2193 = vmatpush.msra.mxu0 0.0
    %2194 = vmatpush.msra.mxu0 0.0
    %2195 = vmatpush.msra.mxu0 0.0
    %2196 = vmatpush.msra.mxu0 0.0
    %2197 = vmatpush.msra.mxu0 0.0
    %2198 = vmatpush.msra.mxu0 0.0
    %2199 = vmatpush.msra.mxu0 0.0
    %2200 = vmatpush.msra.mxu0 0.0
    %2201 = vmatpush.msra.mxu0 0.0
    %2202 = vmatpush.msra.mxu0 0.0
    %2203 = vmatpush.msra.mxu0 0.0
    %2204 = vmatpush.msra.mxu0 0.0
    %2205 = vmatpush.msra.mxu0 0.0
    %2206 = vmatpush.msra.mxu0 %v2163
    %2207 = vmatmul.f32.gmra.mxu0 %v2157
    %v2208 = vpop.f32.mrf.mxu0
    %v2209 = vadd.f32 0.0, %v2208
    %2210 = vdwg.mxu0
    %2211 = vmatpush.msra.mxu0 0.0
    %2212 = vmatpush.msra.mxu0 0.0
    %2213 = vmatpush.msra.mxu0 0.0
    %2214 = vmatpush.msra.mxu0 0.0
    %2215 = vmatpush.msra.mxu0 0.0
    %2216 = vmatpush.msra.mxu0 0.0
    %2217 = vmatpush.msra.mxu0 0.0
    %2218 = vmatpush.msra.mxu0 0.0
    %2219 = vmatpush.msra.mxu0 0.0
    %2220 = vmatpush.msra.mxu0 0.0
    %2221 = vmatpush.msra.mxu0 0.0
    %2222 = vmatpush.msra.mxu0 0.0
    %2223 = vmatpush.msra.mxu0 0.0
    %2224 = vmatpush.msra.mxu0 0.0
    %2225 = vmatpush.msra.mxu0 0.0
    %2226 = vmatpush.msra.mxu0 %v2166
    %2227 = vmatmul.f32.gmra.mxu0 %v2157
    %v2228 = vpop.f32.mrf.mxu0
    %v2229 = vadd.f32 0.0, %v2228
    %2230 = vdwg.mxu0
    %2231 = vmatpush.msra.mxu0 0.0
    %2232 = vmatpush.msra.mxu0 0.0
    %2233 = vmatpush.msra.mxu0 0.0
    %2234 = vmatpush.msra.mxu0 0.0
    %2235 = vmatpush.msra.mxu0 0.0
    %2236 = vmatpush.msra.mxu0 0.0
    %2237 = vmatpush.msra.mxu0 0.0
    %2238 = vmatpush.msra.mxu0 0.0
    %2239 = vmatpush.msra.mxu0 0.0
    %2240 = vmatpush.msra.mxu0 0.0
    %2241 = vmatpush.msra.mxu0 0.0
    %2242 = vmatpush.msra.mxu0 0.0
    %2243 = vmatpush.msra.mxu0 0.0
    %2244 = vmatpush.msra.mxu0 0.0
    %2245 = vmatpush.msra.mxu0 0.0
    %2246 = vmatpush.msra.mxu0 %v2169
    %2247 = vmatmul.f32.gmra.mxu0 %v2157
    %v2248 = vpop.f32.mrf.mxu0
    %v2249 = vadd.f32 0.0, %v2248
    %2250 = vdwg.mxu0
    %v2251 = vadd.f32 %v2150, %v2189
    %v2252 = vadd.f32 %v2151, %v2209
    %v2253 = vadd.f32 %v2152, %v2229
    %v2254 = vadd.f32 %v2153, %v2249
    %s2255 = scalar_lea.vmem %s3, 32
    %v2256 = vld [vmem:[%s2255] sm:$0xf]
    %v2258 = vsel %vm188, %v2256, 0
    %v2261 = vsel %vm192, %v2049, 0
    %v2264 = vsel %vm192, %v2050, 0
    %v2267 = vsel %vm192, %v2051, 0
    %v2270 = vsel %vm192, %v2052, 0
    %2272 = vmatpush.msra.mxu0 0.0
    %2273 = vmatpush.msra.mxu0 0.0
    %2274 = vmatpush.msra.mxu0 0.0
    %2275 = vmatpush.msra.mxu0 0.0
    %2276 = vmatpush.msra.mxu0 0.0
    %2277 = vmatpush.msra.mxu0 0.0
    %2278 = vmatpush.msra.mxu0 0.0
    %2279 = vmatpush.msra.mxu0 0.0
    %2280 = vmatpush.msra.mxu0 0.0
    %2281 = vmatpush.msra.mxu0 0.0
    %2282 = vmatpush.msra.mxu0 0.0
    %2283 = vmatpush.msra.mxu0 0.0
    %2284 = vmatpush.msra.mxu0 0.0
    %2285 = vmatpush.msra.mxu0 0.0
    %2286 = vmatpush.msra.mxu0 0.0
    %2287 = vmatpush.msra.mxu0 %v2261
    %2288 = vmatmul.f32.gmra.mxu0 %v2258
    %v2289 = vpop.f32.mrf.mxu0
    %v2290 = vadd.f32 0.0, %v2289
    %2291 = vdwg.mxu0
    %2292 = vmatpush.msra.mxu0 0.0
    %2293 = vmatpush.msra.mxu0 0.0
    %2294 = vmatpush.msra.mxu0 0.0
    %2295 = vmatpush.msra.mxu0 0.0
    %2296 = vmatpush.msra.mxu0 0.0
    %2297 = vmatpush.msra.mxu0 0.0
    %2298 = vmatpush.msra.mxu0 0.0
    %2299 = vmatpush.msra.mxu0 0.0
    %2300 = vmatpush.msra.mxu0 0.0
    %2301 = vmatpush.msra.mxu0 0.0
    %2302 = vmatpush.msra.mxu0 0.0
    %2303 = vmatpush.msra.mxu0 0.0
    %2304 = vmatpush.msra.mxu0 0.0
    %2305 = vmatpush.msra.mxu0 0.0
    %2306 = vmatpush.msra.mxu0 0.0
    %2307 = vmatpush.msra.mxu0 %v2264
    %2308 = vmatmul.f32.gmra.mxu0 %v2258
    %v2309 = vpop.f32.mrf.mxu0
    %v2310 = vadd.f32 0.0, %v2309
    %2311 = vdwg.mxu0
    %2312 = vmatpush.msra.mxu0 0.0
    %2313 = vmatpush.msra.mxu0 0.0
    %2314 = vmatpush.msra.mxu0 0.0
    %2315 = vmatpush.msra.mxu0 0.0
    %2316 = vmatpush.msra.mxu0 0.0
    %2317 = vmatpush.msra.mxu0 0.0
    %2318 = vmatpush.msra.mxu0 0.0
    %2319 = vmatpush.msra.mxu0 0.0
    %2320 = vmatpush.msra.mxu0 0.0
    %2321 = vmatpush.msra.mxu0 0.0
    %2322 = vmatpush.msra.mxu0 0.0
    %2323 = vmatpush.msra.mxu0 0.0
    %2324 = vmatpush.msra.mxu0 0.0
    %2325 = vmatpush.msra.mxu0 0.0
    %2326 = vmatpush.msra.mxu0 0.0
    %2327 = vmatpush.msra.mxu0 %v2267
    %2328 = vmatmul.f32.gmra.mxu0 %v2258
    %v2329 = vpop.f32.mrf.mxu0
    %v2330 = vadd.f32 0.0, %v2329
    %2331 = vdwg.mxu0
    %2332 = vmatpush.msra.mxu0 0.0
    %2333 = vmatpush.msra.mxu0 0.0
    %2334 = vmatpush.msra.mxu0 0.0
    %2335 = vmatpush.msra.mxu0 0.0
    %2336 = vmatpush.msra.mxu0 0.0
    %2337 = vmatpush.msra.mxu0 0.0
    %2338 = vmatpush.msra.mxu0 0.0
    %2339 = vmatpush.msra.mxu0 0.0
    %2340 = vmatpush.msra.mxu0 0.0
    %2341 = vmatpush.msra.mxu0 0.0
    %2342 = vmatpush.msra.mxu0 0.0
    %2343 = vmatpush.msra.mxu0 0.0
    %2344 = vmatpush.msra.mxu0 0.0
    %2345 = vmatpush.msra.mxu0 0.0
    %2346 = vmatpush.msra.mxu0 0.0
    %2347 = vmatpush.msra.mxu0 %v2270
    %2348 = vmatmul.f32.gmra.mxu0 %v2258
    %v2349 = vpop.f32.mrf.mxu0
    %v2350 = vadd.f32 0.0, %v2349
    %2351 = vdwg.mxu0
    %v2352 = vadd.f32 %v2251, %v2290
    %v2353 = vadd.f32 %v2252, %v2310
    %v2354 = vadd.f32 %v2253, %v2330
    %v2355 = vadd.f32 %v2254, %v2350
    %2357 = vset.pattern.permute.xlu0 0
    %2358 = vperm.xlu0 %2357, %v1327
    %v2359 = vpop.permute.xlu0 %2358
    %v2361 = vadd.f32 %v2352, %v2359
    %v2362 = vadd.f32 %v2353, %v2359
    %v2363 = vadd.f32 %v2354, %v2359
    %v2364 = vadd.f32 %v2355, %v2359
    %v2365 = vmul.f32 %v2361, %v1193
    %v2366 = vmul.f32 %v2362, %v1194
    %v2367 = vmul.f32 %v2363, %v1195
    %v2368 = vmul.f32 %v2364, %v1196
    %v2369 = vsel %vm192, %v2365, 0.0
    %v2370 = vsel %vm192, %v2366, 0.0
    %v2371 = vadd.f32 %v2369, %v2370
    %v2372 = vsel %vm192, %v2367, 0.0
    %v2373 = vadd.f32 %v2371, %v2372
    %v2374 = vsel %vm192, %v2368, 0.0
    %v2375 = vadd.f32 %v2373, %v2374
    %2376 = vadd.xlane.f32.xlu0 %v2375
    %v2377 = vpop.xlane.xlu0 %2376
    %v2378 = vmul.f32 %v2377, 0.00390625
    %v2379 = vmul.f32 %v2365, %v2365
    %v2380 = vmul.f32 %v2366, %v2366
    %v2381 = vmul.f32 %v2367, %v2367
    %v2382 = vmul.f32 %v2368, %v2368
    %v2383 = vsel %vm192, %v2379, 0.0
    %v2384 = vsel %vm192, %v2380, 0.0
    %v2385 = vadd.f32 %v2383, %v2384
    %v2386 = vsel %vm192, %v2381, 0.0
    %v2387 = vadd.f32 %v2385, %v2386
    %v2388 = vsel %vm192, %v2382, 0.0
    %v2389 = vadd.f32 %v2387, %v2388
    %2390 = vadd.xlane.f32.xlu0 %v2389
    %v2391 = vpop.xlane.xlu0 %2390
    %v2392 = vmul.f32 %v2391, 0.00390625
    %v2393 = vmul.f32 %v2378, %v2378
    %v2394 = vsub.f32 %v2392, %v2393
    %v2395 = vadd.f32 %v2394, 1e-05
    %v2396 = vrsqrt.pop %v2395
    %v2397 = vmul.f32 %v2396, %v2395
    %v2398 = vmul.f32 %v2397, %v2396
    %v2399 = vmul.f32 0.5, %v2398
    %v2400 = vsub.f32 1.5, %v2399
    %v2401 = vmul.f32 %v2396, %v2400
    %vm2402 = vweird.f32 %v2395
    %vm2403 = vweird.f32 %v2396
    %vm2404 = vmor %vm2402, %vm2403
    %v2405 = vsel %vm2404, %v2396, %v2401
    %v2406 = vmul.f32 %v2378, %v1193
    %v2407 = vmul.f32 %v2378, %v1194
    %v2408 = vmul.f32 %v2378, %v1195
    %v2409 = vmul.f32 %v2378, %v1196
    %v2410 = vmul.f32 %v2405, %v1193
    %v2411 = vmul.f32 %v2405, %v1194
    %v2412 = vmul.f32 %v2405, %v1195
    %v2413 = vmul.f32 %v2405, %v1196
    %v2414 = vmul.f32 %v2361, %v1254
    %v2415 = vmul.f32 %v2362, %v1255
    %v2416 = vmul.f32 %v2363, %v1256
    %v2417 = vmul.f32 %v2364, %v1257
    %v2418 = vsel %vm192, %v2414, 0.0
    %v2419 = vsel %vm192, %v2415, 0.0
    %v2420 = vadd.f32 %v2418, %v2419
    %v2421 = vsel %vm192, %v2416, 0.0
    %v2422 = vadd.f32 %v2420, %v2421
    %v2423 = vsel %vm192, %v2417, 0.0
    %v2424 = vadd.f32 %v2422, %v2423
    %2425 = vadd.xlane.f32.xlu0 %v2424
    %v2426 = vpop.xlane.xlu0 %2425
    %v2427 = vmul.f32 %v2426, 0.00390625
    %v2428 = vmul.f32 %v2414, %v2414
    %v2429 = vmul.f32 %v2415, %v2415
    %v2430 = vmul.f32 %v2416, %v2416
    %v2431 = vmul.f32 %v2417, %v2417
    %v2432 = vsel %vm192, %v2428, 0.0
    %v2433 = vsel %vm192, %v2429, 0.0
    %v2434 = vadd.f32 %v2432, %v2433
    %v2435 = vsel %vm192, %v2430, 0.0
    %v2436 = vadd.f32 %v2434, %v2435
    %v2437 = vsel %vm192, %v2431, 0.0
    %v2438 = vadd.f32 %v2436, %v2437
    %2439 = vadd.xlane.f32.xlu0 %v2438
    %v2440 = vpop.xlane.xlu0 %2439
    %v2441 = vmul.f32 %v2440, 0.00390625
    %v2442 = vmul.f32 %v2427, %v2427
    %v2443 = vsub.f32 %v2441, %v2442
    %v2444 = vadd.f32 %v2443, 1e-05
    %v2445 = vrsqrt.pop %v2444
    %v2446 = vmul.f32 %v2445, %v2444
    %v2447 = vmul.f32 %v2446, %v2445
    %v2448 = vmul.f32 0.5, %v2447
    %v2449 = vsub.f32 1.5, %v2448
    %v2450 = vmul.f32 %v2445, %v2449
    %vm2451 = vweird.f32 %v2444
    %vm2452 = vweird.f32 %v2445
    %vm2453 = vmor %vm2451, %vm2452
    %v2454 = vsel %vm2453, %v2445, %v2450
    %v2455 = vmul.f32 %v2427, %v1254
    %v2456 = vmul.f32 %v2427, %v1255
    %v2457 = vmul.f32 %v2427, %v1256
    %v2458 = vmul.f32 %v2427, %v1257
    %v2459 = vmul.f32 %v2454, %v1254
    %v2460 = vmul.f32 %v2454, %v1255
    %v2461 = vmul.f32 %v2454, %v1256
    %v2462 = vmul.f32 %v2454, %v1257
    %v2463 = vadd.f32 %v2406, %v2455
    %v2464 = vadd.f32 %v2407, %v2456
    %v2465 = vadd.f32 %v2408, %v2457
    %v2466 = vadd.f32 %v2409, %v2458
    %v2467 = vadd.f32 %v2410, %v2459
    %v2468 = vadd.f32 %v2411, %v2460
    %v2469 = vadd.f32 %v2412, %v2461
    %v2470 = vadd.f32 %v2413, %v2462
    %v2471 = vsub.f32 %v2361, %v2463
    %v2472 = vsub.f32 %v2362, %v2464
    %v2473 = vsub.f32 %v2363, %v2465
    %v2474 = vsub.f32 %v2364, %v2466
    %v2475 = vmul.f32 %v2471, %v2467
    %v2476 = vmul.f32 %v2472, %v2468
    %v2477 = vmul.f32 %v2473, %v2469
    %v2478 = vmul.f32 %v2474, %v2470
    %v2483 = vrot.slane %v2476, 4
    %v2484 = vrot.slane %v2478, 4
    %v2485 = vsel %vm192, %v2475, %v2483
    %v2486 = vsel %vm192, %v2477, %v2484
    %v2489 = vadd.f32 %v21, %v2485
    %v2490 = vadd.f32 %v22, %v2486
    %v2491 = vmax.f32 %v2489, 0.0
    %v2492 = vmax.f32 %v2490, 0.0
    %2493 = vst [vmem:[#allocation2] sm:$0xff] %v2491
    %2494 = vst [vmem:[#allocation2 + $0x8] sm:$0xff] %v2492
    // Predicated region
    $region22: #{tpu_custom_call.1} parent=1 // pred_check
      _
    $region23: #{tpu_custom_call.1} parent=1 // pred_check_branch
      %2496 = sbr.rel (0) target = $region25
    $region24: #{tpu_custom_call.1} parent=1 // pred_region
      %2498 = vsyncadd [#allocation3], 0
      %s2500 = sshll.u32 [#allocation2], 4
      %s2501 = int_to_ptr.vmem [resolvable:$true] %s2500
      %s2502 = sshll.u32 %s5, 4
      %s2503 = int_to_ptr.hbm [resolvable:$true] %s2502
      %2505 = dma.vmem_to_hbm [thread:$0]  %s2501, 256, %s2503, [#allocation3]
    $region25: #{tpu_custom_call.1} parent=1 // pred_fallthru
      _
    // Predicated region
    $region26: #{tpu_custom_call.1} parent=1 // pred_check
      _
    $region27: #{tpu_custom_call.1} parent=1 // pred_check_branch
      %2507 = sbr.rel (0) target = $region29
    $region28: #{tpu_custom_call.1} parent=1 // pred_region
      %2509 = dma.done [#allocation3], 256
    $region29: #{tpu_custom_call.1} parent=1 // pred_fallthru
      _
    %2510 = vsyncpa [#allocation3], 1

</llo_original>
